<compile_context>
chip_gen: v7x
topology: tpu7x:2x2x1
jax: 0.10.0
libtpu: 0.0.40
codegen_flags: <defaults>
</compile_context>

<pallas_src>
import math
import functools

import jax
import jax.numpy as jnp
from jax.experimental import pallas as pl
from jax.experimental.pallas import tpu as pltpu


def _cross_attention_kernel(face_ref, voice_ref, adapter_ref, mask_ref,
                            wq_ref, wk_ref, wv_ref, wfc_ref,
                            gamma_ref, beta_ref, out_ref,
                            *, n_heads, d_k, d_v, eps, matmul_dtype):
    cd = matmul_dtype
    B, S_q, S_kv = mask_ref.shape              # batch block
    Nq, d_model = face_ref.shape               # Nq = B * S_q

    # Residual stays f32; this is the only in-kernel activation cast (voice,
    # adapter and all weights arrive from the wrapper already in matmul_dtype).
    face_f32 = face_ref[...]                   # (Nq, d_model) f32
    face_c = face_f32.astype(cd)
    voice = voice_ref[...]                     # (Nkv, d_model) matmul_dtype
    adapter = adapter_ref[...]

    # ---- fused projections: one (N, d_model)@(d_model, H*d_k|H*d_v) MXU matmul
    # each (full lane fill, no per-head weight tiles, no broadcasts).  The
    # 1/sqrt(d_k) softmax scale is folded into W_Q by the wrapper.
    q2 = jnp.dot(face_c, wq_ref[...], preferred_element_type=jnp.float32)
    k2 = jnp.dot(voice, wk_ref[...], preferred_element_type=jnp.float32)
    v2 = jnp.dot(adapter, wv_ref[...], preferred_element_type=jnp.float32)

    maskv = mask_ref[...]                      # (B, S_q, S_kv) additive f32
    wfc = wfc_ref[...]                         # (H*d_v, d_model) matmul_dtype

    # ---- per-head attention with fused fc + head reduction.
    # Python loop unrolls at trace time; heads sit in lane blocks of q2/k2/v2,
    # so static lane slices + leading-dim reshapes (layout-cheap) replace a
    # lane->major relayout.  The per-head slices are kept f32 for the reshape
    # and cast to matmul_dtype right before the MXU (f32 accumulation kept).
    output = jnp.zeros((Nq, d_model), jnp.float32)   # f32 head accumulator
    for h in range(n_heads):
        qh = q2[:, h * d_k:(h + 1) * d_k].reshape(B, S_q, d_k).astype(cd)
        kh = k2[:, h * d_k:(h + 1) * d_k].reshape(B, S_kv, d_k).astype(cd)
        vh = v2[:, h * d_v:(h + 1) * d_v].reshape(B, S_kv, d_v).astype(cd)

        # scores + additive mask (0 / -1e30): same shape, plain add (no concat,
        # no broadcast); finite mask keeps fully-masked rows NaN-free.
        s = jnp.einsum('bqd,bkd->bqk', qh, kh,
                       preferred_element_type=jnp.float32) + maskv
        m = jnp.max(s, axis=-1, keepdims=True)
        p = jnp.exp(s - m)
        denom = jnp.sum(p, axis=-1, keepdims=True)

        # Deferred softmax normalization: scale the (B,S_q,d_v) context rather
        # than the (B,S_q,S_kv) probability matrix; reciprocal on the EUP.
        ctx = jnp.einsum('bqk,bkd->bqd', p.astype(cd), vh,
                         preferred_element_type=jnp.float32)
        ctx = ctx * pl.reciprocal(denom, approx=True)

        # Fused output projection + head reduction:
        #   output += ctx_h @ W_fc[h]   (== concat_h(ctx_h) @ W_fc)
        ctx2 = ctx.reshape(Nq, d_v).astype(cd)
        output = output + jnp.dot(ctx2, wfc[h * d_v:(h + 1) * d_v, :],
                                  preferred_element_type=jnp.float32)
    # TODO(synk): nn.Dropout is identity in eval mode; no dropout RNG applied.

    # ---- residual + LayerNorm (all f32 elementwise; v5e has no bf16 VPU/EUP).
    x = output + face_f32
    mean = jnp.mean(x, axis=-1, keepdims=True)
    var = jnp.mean((x - mean) ** 2, axis=-1, keepdims=True)
    xhat = (x - mean) * jax.lax.rsqrt(var + eps)
    out_ref[...] = (xhat * gamma_ref[...] + beta_ref[...]).astype(out_ref.dtype)


def cross_attention(input_face, input_voice, input_adapter, attn_mask, params,
                    *, n_heads, d_k, d_v, eps=1e-5, matmul_dtype=jnp.bfloat16,
                    num_batch_blocks=1):
    B, S_q, d_model = input_face.shape
    S_kv = input_voice.shape[1]
    assert B % num_batch_blocks == 0, "batch must divide evenly into blocks"
    bb = B // num_batch_blocks
    wq, wk, wv, wfc, gamma, beta = params
    cd = matmul_dtype

    # ---- one-time operand prep in the wrapper (free w.r.t. the kernel) ----
    # Fold 1/sqrt(d_k) into W_Q (in f32), then cast every matmul-only operand
    # to matmul_dtype so the kernel DMAs half the bytes and does no weight casts.
    wq_s = (wq.astype(jnp.float32) * jnp.float32(1.0 / math.sqrt(d_k))).astype(cd)
    wk_c = wk.astype(cd)                               # (d_model, H*d_k)
    wv_c = wv.astype(cd)                               # (d_model, H*d_v)
    wfc_c = wfc.astype(cd)                             # (H*d_v, d_model)
    gamma2 = gamma.reshape(1, d_model).astype(jnp.float32)
    beta2 = beta.reshape(1, d_model).astype(jnp.float32)

    # Additive mask: 0 where attended, -1e30 where masked (finite -> NaN-safe).
    mask_add = jnp.where(attn_mask > 0, jnp.float32(-1e30), jnp.float32(0.0))

    # Flat 2-D slabs (B*S, d_model).  face stays f32 (residual); voice/adapter
    # are matmul-only operands, so they travel in matmul_dtype.
    face2 = input_face.reshape(B * S_q, d_model).astype(jnp.float32)
    voice2 = input_voice.reshape(B * S_kv, d_model).astype(cd)
    adapter2 = input_adapter.reshape(B * S_kv, d_model).astype(cd)

    kernel = functools.partial(_cross_attention_kernel, n_heads=n_heads,
                               d_k=d_k, d_v=d_v, eps=eps, matmul_dtype=cd)

    grid_spec = pltpu.PrefetchScalarGridSpec(
        num_scalar_prefetch=0,
        # One step covers the whole batch by default (cheapest at toy shapes);
        # num_batch_blocks>=2 gives >=2 independent "parallel" steps so large-B
        # runs can shard across v7x's two TensorCores.
        grid=(num_batch_blocks,),
        in_specs=[
            pl.BlockSpec((bb * S_q, d_model), lambda i: (i, 0)),        # face (residual)
            pl.BlockSpec((bb * S_kv, d_model), lambda i: (i, 0)),       # voice
            pl.BlockSpec((bb * S_kv, d_model), lambda i: (i, 0)),       # adapter
            pl.BlockSpec((bb, S_q, S_kv), lambda i: (i, 0, 0)),         # additive mask
            pl.BlockSpec((d_model, n_heads * d_k), lambda i: (0, 0)),   # W_Q (scaled)
            pl.BlockSpec((d_model, n_heads * d_k), lambda i: (0, 0)),   # W_K
            pl.BlockSpec((d_model, n_heads * d_v), lambda i: (0, 0)),   # W_V
            pl.BlockSpec((n_heads * d_v, d_model), lambda i: (0, 0)),   # fc
            pl.BlockSpec((1, d_model), lambda i: (0, 0)),               # gamma
            pl.BlockSpec((1, d_model), lambda i: (0, 0)),               # beta
        ],
        out_specs=pl.BlockSpec((bb * S_q, d_model), lambda i: (i, 0)),
    )

    out2 = pl.pallas_call(
        kernel,
        out_shape=jax.ShapeDtypeStruct((B * S_q, d_model), jnp.float32),
        grid_spec=grid_spec,
        compiler_params=pltpu.CompilerParams(
            dimension_semantics=("parallel",)),   # batch blocks are independent
    )(face2, voice2, adapter2, mask_add, wq_s, wk_c, wv_c, wfc_c, gamma2, beta2)

    return out2.reshape(B, S_q, d_model)


def _reference(input_face, input_voice, input_adapter, attn_mask, params,
               *, n_heads, d_k, d_v, eps=1e-5):
    """Pure-JAX f32 replica of the PyTorch forward (eval mode) for validation."""
    wq, wk, wv, wfc, gamma, beta = params
    B, S_q, d_model = input_face.shape
    Q = (input_face @ wq).reshape(B, S_q, n_heads, d_k).transpose(0, 2, 1, 3)
    K = (input_voice @ wk).reshape(B, -1, n_heads, d_k).transpose(0, 2, 1, 3)
    V = (input_adapter @ wv).reshape(B, -1, n_heads, d_v).transpose(0, 2, 1, 3)
    scores = jnp.einsum("bhqd,bhkd->bhqk", Q, K) / math.sqrt(d_k)
    mask = attn_mask[:, None, :, :] > 0
    scores = jnp.where(mask, -jnp.inf, scores)
    attn = jax.nn.softmax(scores, axis=-1)
    ctx = jnp.einsum("bhqk,bhkd->bhqd", attn, V).transpose(0, 2, 1, 3)
    ctx = ctx.reshape(B, S_q, n_heads * d_v)
    out = ctx @ wfc + input_face
    mean = out.mean(-1, keepdims=True)
    var = ((out - mean) ** 2).mean(-1, keepdims=True)
    return (out - mean) / jnp.sqrt(var + eps) * gamma + beta


if __name__ == "__main__":
    # Module hyperparameters (small, consistent with the reference module).
    d_model, n_heads, d_k, d_v = 32, 4, 8, 8
    B, S = 2, 8

    key = jax.random.PRNGKey(0)
    k1, k2, k3, k4, k5, k6, k7 = jax.random.split(key, 7)

    # Deterministic synthetic parameters ([in, out] layout == PyTorch W^T).
    wq = jax.random.normal(k1, (d_model, n_heads * d_k), jnp.float32) * 0.1
    wk = jax.random.normal(k2, (d_model, n_heads * d_k), jnp.float32) * 0.1
    wv = jax.random.normal(k3, (d_model, n_heads * d_v), jnp.float32) * 0.1
    wfc = jax.random.normal(k4, (n_heads * d_v, d_model), jnp.float32) * 0.1
    gamma = jnp.ones((d_model,), jnp.float32)    # LayerNorm default init
    beta = jnp.zeros((d_model,), jnp.float32)
    params = (wq, wk, wv, wfc, gamma, beta)

    # Inputs.
    input_face = jax.random.normal(k5, (B, S, d_model), jnp.float32)
    input_voice = jax.random.normal(k6, (B, S, d_model), jnp.float32)
    input_adapter = jax.random.normal(k7, (B, S, d_model), jnp.float32)

    # Mask: 1.0 => masked (strictly-upper triangle, no fully-masked rows).
    tri = jnp.triu(jnp.ones((S, S), jnp.float32), k=1)
    attn_mask = jnp.broadcast_to(tri, (B, S, S))

    ref = _reference(input_face, input_voice, input_adapter, attn_mask, params,
                     n_heads=n_heads, d_k=d_k, d_v=d_v)

    # 1) Default perf path: bf16 MXU operands, whole batch in one grid step.
    #    Tolerance covers bf16 operand rounding + approximate EUP reciprocal.
    out_bf16 = cross_attention(input_face, input_voice, input_adapter, attn_mask,
                               params, n_heads=n_heads, d_k=d_k, d_v=d_v)
    out_bf16 = jax.block_until_ready(out_bf16)
    assert out_bf16.shape == (B, S, d_model)
    err_bf16 = jnp.max(jnp.abs(out_bf16 - ref))
    assert jnp.allclose(out_bf16, ref, atol=2e-2, rtol=2e-2), \
        f"bf16 path mismatch vs reference (max abs err {err_bf16})"

    # 2) Exact-f32 matmul path: tight structural check (only the approximate
    #    softmax reciprocal separates it from the reference).
    out_f32 = cross_attention(input_face, input_voice, input_adapter, attn_mask,
                              params, n_heads=n_heads, d_k=d_k, d_v=d_v,
                              matmul_dtype=jnp.float32)
    out_f32 = jax.block_until_ready(out_f32)
    err_f32 = jnp.max(jnp.abs(out_f32 - ref))
    assert jnp.allclose(out_f32, ref, atol=5e-3, rtol=5e-3), \
        f"f32 path mismatch vs reference (max abs err {err_f32})"

    # 3) Batch-tiled path (2 grid steps, "parallel" axis -> v7x 2-TC shardable).
    out_tiled = cross_attention(input_face, input_voice, input_adapter, attn_mask,
                                params, n_heads=n_heads, d_k=d_k, d_v=d_v,
                                num_batch_blocks=2)
    out_tiled = jax.block_until_ready(out_tiled)
    err_tiled = jnp.max(jnp.abs(out_tiled - ref))
    assert jnp.allclose(out_tiled, ref, atol=2e-2, rtol=2e-2), \
        f"batch-tiled path mismatch vs reference (max abs err {err_tiled})"

    print("KERNEL_OK")
</pallas_src>

<mosaic_0001>
module attributes {stable_mosaic.version = 11 : i64} {
  func.func @_cross_attention_kernel(%arg0: i32, %arg1: memref<16x32xf32, #tpu.memory_space<vmem>>, %arg2: memref<16x32xbf16, #tpu.memory_space<vmem>>, %arg3: memref<16x32xbf16, #tpu.memory_space<vmem>>, %arg4: memref<2x8x8xf32, #tpu.memory_space<vmem>>, %arg5: memref<32x32xbf16, #tpu.memory_space<vmem>>, %arg6: memref<32x32xbf16, #tpu.memory_space<vmem>>, %arg7: memref<32x32xbf16, #tpu.memory_space<vmem>>, %arg8: memref<32x32xbf16, #tpu.memory_space<vmem>>, %arg9: memref<1x32xf32, #tpu.memory_space<vmem>>, %arg10: memref<1x32xf32, #tpu.memory_space<vmem>>, %arg11: memref<16x32xf32, #tpu.memory_space<vmem>>) attributes {dimension_semantics = [#tpu.dimension_semantics<parallel>], iteration_bounds = array<i64: 1>, scalar_prefetch = 0 : i64, scratch_operands = 0 : i64, tpu.core_type = #tpu.core_type<tc>, window_params = [{transform_indices = @transform_0, window_bounds = array<i64: 16, 32>}, {transform_indices = @transform_1, window_bounds = array<i64: 16, 32>}, {transform_indices = @transform_2, window_bounds = array<i64: 16, 32>}, {transform_indices = @transform_3, window_bounds = array<i64: 2, 8, 8>}, {pipeline_mode = #tpu.pipeline_mode<synchronous>, transform_indices = @transform_4, window_bounds = array<i64: 32, 32>}, {pipeline_mode = #tpu.pipeline_mode<synchronous>, transform_indices = @transform_5, window_bounds = array<i64: 32, 32>}, {pipeline_mode = #tpu.pipeline_mode<synchronous>, transform_indices = @transform_6, window_bounds = array<i64: 32, 32>}, {pipeline_mode = #tpu.pipeline_mode<synchronous>, transform_indices = @transform_7, window_bounds = array<i64: 32, 32>}, {pipeline_mode = #tpu.pipeline_mode<synchronous>, transform_indices = @transform_8, window_bounds = array<i64: 1, 32>}, {pipeline_mode = #tpu.pipeline_mode<synchronous>, transform_indices = @transform_9, window_bounds = array<i64: 1, 32>}, {transform_indices = @transform_10, window_bounds = array<i64: 16, 32>}]} {
    %c0 = arith.constant 0 : index
    %c0_0 = arith.constant 0 : index
    %0 = vector.load %arg1[%c0, %c0_0] : memref<16x32xf32, #tpu.memory_space<vmem>>, vector<16x32xf32>
    %1 = arith.truncf %0 : vector<16x32xf32> to vector<16x32xbf16>
    %c0_1 = arith.constant 0 : index
    %c0_2 = arith.constant 0 : index
    %2 = vector.load %arg2[%c0_1, %c0_2] : memref<16x32xbf16, #tpu.memory_space<vmem>>, vector<16x32xbf16>
    %c0_3 = arith.constant 0 : index
    %c0_4 = arith.constant 0 : index
    %3 = vector.load %arg3[%c0_3, %c0_4] : memref<16x32xbf16, #tpu.memory_space<vmem>>, vector<16x32xbf16>
    %c0_5 = arith.constant 0 : index
    %c0_6 = arith.constant 0 : index
    %4 = vector.load %arg5[%c0_5, %c0_6] : memref<32x32xbf16, #tpu.memory_space<vmem>>, vector<32x32xbf16>
    %cst = arith.constant dense<0.000000e+00> : vector<16x32xf32>
    %5 = tpu.matmul %1, %4, %cst {dimension_numbers = #tpu.dot_dimension_numbers<[1], [0], [0], [1], [0, 0, 1, 1], [], []>} : vector<16x32xbf16>, vector<32x32xbf16>, vector<16x32xf32> -> vector<16x32xf32>
    %c0_7 = arith.constant 0 : index
    %c0_8 = arith.constant 0 : index
    %6 = vector.load %arg6[%c0_7, %c0_8] : memref<32x32xbf16, #tpu.memory_space<vmem>>, vector<32x32xbf16>
    %cst_9 = arith.constant dense<0.000000e+00> : vector<16x32xf32>
    %7 = tpu.matmul %2, %6, %cst_9 {dimension_numbers = #tpu.dot_dimension_numbers<[1], [0], [0], [1], [0, 0, 1, 1], [], []>} : vector<16x32xbf16>, vector<32x32xbf16>, vector<16x32xf32> -> vector<16x32xf32>
    %c0_10 = arith.constant 0 : index
    %c0_11 = arith.constant 0 : index
    %8 = vector.load %arg7[%c0_10, %c0_11] : memref<32x32xbf16, #tpu.memory_space<vmem>>, vector<32x32xbf16>
    %cst_12 = arith.constant dense<0.000000e+00> : vector<16x32xf32>
    %9 = tpu.matmul %3, %8, %cst_12 {dimension_numbers = #tpu.dot_dimension_numbers<[1], [0], [0], [1], [0, 0, 1, 1], [], []>} : vector<16x32xbf16>, vector<32x32xbf16>, vector<16x32xf32> -> vector<16x32xf32>
    %c0_13 = arith.constant 0 : index
    %c0_14 = arith.constant 0 : index
    %c0_15 = arith.constant 0 : index
    %10 = vector.load %arg4[%c0_13, %c0_14, %c0_15] : memref<2x8x8xf32, #tpu.memory_space<vmem>>, vector<2x8x8xf32>
    %c0_16 = arith.constant 0 : index
    %c0_17 = arith.constant 0 : index
    %11 = vector.load %arg8[%c0_16, %c0_17] : memref<32x32xbf16, #tpu.memory_space<vmem>>, vector<32x32xbf16>
    %cst_18 = arith.constant 0.000000e+00 : f32
    %12 = vector.broadcast %cst_18 : f32 to vector<16x32xf32>
    %13 = vector.extract_strided_slice %5 {offsets = [0, 0], sizes = [16, 8], strides = [1, 1]} : vector<16x32xf32> to vector<16x8xf32>
    %14 = vector.shape_cast %13 : vector<16x8xf32> to vector<2x8x8xf32>
    %15 = arith.truncf %14 : vector<2x8x8xf32> to vector<2x8x8xbf16>
    %16 = vector.extract_strided_slice %7 {offsets = [0, 0], sizes = [16, 8], strides = [1, 1]} : vector<16x32xf32> to vector<16x8xf32>
    %17 = vector.shape_cast %16 : vector<16x8xf32> to vector<2x8x8xf32>
    %18 = arith.truncf %17 : vector<2x8x8xf32> to vector<2x8x8xbf16>
    %19 = vector.extract_strided_slice %9 {offsets = [0, 0], sizes = [16, 8], strides = [1, 1]} : vector<16x32xf32> to vector<16x8xf32>
    %20 = vector.shape_cast %19 : vector<16x8xf32> to vector<2x8x8xf32>
    %21 = arith.truncf %20 : vector<2x8x8xf32> to vector<2x8x8xbf16>
    "tpu.trace_start"() <{level = 10 : i32, message = "bqd,bkd->bqk"}> : () -> ()
    %cst_19 = arith.constant dense<0.000000e+00> : vector<2x8x8xf32>
    %22 = tpu.matmul %15, %18, %cst_19 {dimension_numbers = #tpu.dot_dimension_numbers<[2], [2], [1], [1], [0, 0, 0, 1, 1, 1], [0], [0]>} : vector<2x8x8xbf16>, vector<2x8x8xbf16>, vector<2x8x8xf32> -> vector<2x8x8xf32>
    "tpu.trace_stop"() : () -> ()
    %23 = arith.addf %22, %10 : vector<2x8x8xf32>
    %cst_20 = arith.constant dense<0xFF800000> : vector<2x8xf32>
    %24 = vector.multi_reduction <maximumf>, %23, %cst_20 [2] : vector<2x8x8xf32> to vector<2x8xf32>
    %25 = vector.shape_cast %24 : vector<2x8xf32> to vector<2x8x1xf32>
    %26 = vector.broadcast %25 : vector<2x8x1xf32> to vector<2x8x8xf32>
    %27 = arith.subf %23, %26 : vector<2x8x8xf32>
    %28 = math.exp %27 : vector<2x8x8xf32>
    %cst_21 = arith.constant dense<0.000000e+00> : vector<2x8xf32>
    %29 = vector.multi_reduction <add>, %28, %cst_21 [2] : vector<2x8x8xf32> to vector<2x8xf32>
    %30 = vector.shape_cast %29 : vector<2x8xf32> to vector<2x8x1xf32>
    %31 = arith.truncf %28 : vector<2x8x8xf32> to vector<2x8x8xbf16>
    "tpu.trace_start"() <{level = 10 : i32, message = "bqk,bkd->bqd"}> : () -> ()
    %cst_22 = arith.constant dense<0.000000e+00> : vector<2x8x8xf32>
    %32 = tpu.matmul %31, %21, %cst_22 {dimension_numbers = #tpu.dot_dimension_numbers<[2], [1], [1], [2], [0, 0, 0, 1, 1, 2], [0], [0]>} : vector<2x8x8xbf16>, vector<2x8x8xbf16>, vector<2x8x8xf32> -> vector<2x8x8xf32>
    "tpu.trace_stop"() : () -> ()
    %33 = tpu.reciprocal %30 {approx = true} : vector<2x8x1xf32> -> vector<2x8x1xf32>
    %34 = vector.broadcast %33 : vector<2x8x1xf32> to vector<2x8x8xf32>
    %35 = arith.mulf %32, %34 : vector<2x8x8xf32>
    %36 = vector.shape_cast %35 : vector<2x8x8xf32> to vector<16x8xf32>
    %37 = arith.truncf %36 : vector<16x8xf32> to vector<16x8xbf16>
    %38 = vector.extract_strided_slice %11 {offsets = [0, 0], sizes = [8, 32], strides = [1, 1]} : vector<32x32xbf16> to vector<8x32xbf16>
    %cst_23 = arith.constant dense<0.000000e+00> : vector<16x32xf32>
    %39 = tpu.matmul %37, %38, %cst_23 {dimension_numbers = #tpu.dot_dimension_numbers<[1], [0], [0], [1], [0, 0, 1, 1], [], []>} : vector<16x8xbf16>, vector<8x32xbf16>, vector<16x32xf32> -> vector<16x32xf32>
    %40 = arith.addf %12, %39 : vector<16x32xf32>
    %41 = vector.extract_strided_slice %5 {offsets = [0, 8], sizes = [16, 8], strides = [1, 1]} : vector<16x32xf32> to vector<16x8xf32>
    %42 = vector.shape_cast %41 : vector<16x8xf32> to vector<2x8x8xf32>
    %43 = arith.truncf %42 : vector<2x8x8xf32> to vector<2x8x8xbf16>
    %44 = vector.extract_strided_slice %7 {offsets = [0, 8], sizes = [16, 8], strides = [1, 1]} : vector<16x32xf32> to vector<16x8xf32>
    %45 = vector.shape_cast %44 : vector<16x8xf32> to vector<2x8x8xf32>
    %46 = arith.truncf %45 : vector<2x8x8xf32> to vector<2x8x8xbf16>
    %47 = vector.extract_strided_slice %9 {offsets = [0, 8], sizes = [16, 8], strides = [1, 1]} : vector<16x32xf32> to vector<16x8xf32>
    %48 = vector.shape_cast %47 : vector<16x8xf32> to vector<2x8x8xf32>
    %49 = arith.truncf %48 : vector<2x8x8xf32> to vector<2x8x8xbf16>
    "tpu.trace_start"() <{level = 10 : i32, message = "bqd,bkd->bqk"}> : () -> ()
    %cst_24 = arith.constant dense<0.000000e+00> : vector<2x8x8xf32>
    %50 = tpu.matmul %43, %46, %cst_24 {dimension_numbers = #tpu.dot_dimension_numbers<[2], [2], [1], [1], [0, 0, 0, 1, 1, 1], [0], [0]>} : vector<2x8x8xbf16>, vector<2x8x8xbf16>, vector<2x8x8xf32> -> vector<2x8x8xf32>
    "tpu.trace_stop"() : () -> ()
    %51 = arith.addf %50, %10 : vector<2x8x8xf32>
    %cst_25 = arith.constant dense<0xFF800000> : vector<2x8xf32>
    %52 = vector.multi_reduction <maximumf>, %51, %cst_25 [2] : vector<2x8x8xf32> to vector<2x8xf32>
    %53 = vector.shape_cast %52 : vector<2x8xf32> to vector<2x8x1xf32>
    %54 = vector.broadcast %53 : vector<2x8x1xf32> to vector<2x8x8xf32>
    %55 = arith.subf %51, %54 : vector<2x8x8xf32>
    %56 = math.exp %55 : vector<2x8x8xf32>
    %cst_26 = arith.constant dense<0.000000e+00> : vector<2x8xf32>
    %57 = vector.multi_reduction <add>, %56, %cst_26 [2] : vector<2x8x8xf32> to vector<2x8xf32>
    %58 = vector.shape_cast %57 : vector<2x8xf32> to vector<2x8x1xf32>
    %59 = arith.truncf %56 : vector<2x8x8xf32> to vector<2x8x8xbf16>
    "tpu.trace_start"() <{level = 10 : i32, message = "bqk,bkd->bqd"}> : () -> ()
    %cst_27 = arith.constant dense<0.000000e+00> : vector<2x8x8xf32>
    %60 = tpu.matmul %59, %49, %cst_27 {dimension_numbers = #tpu.dot_dimension_numbers<[2], [1], [1], [2], [0, 0, 0, 1, 1, 2], [0], [0]>} : vector<2x8x8xbf16>, vector<2x8x8xbf16>, vector<2x8x8xf32> -> vector<2x8x8xf32>
    "tpu.trace_stop"() : () -> ()
    %61 = tpu.reciprocal %58 {approx = true} : vector<2x8x1xf32> -> vector<2x8x1xf32>
    %62 = vector.broadcast %61 : vector<2x8x1xf32> to vector<2x8x8xf32>
    %63 = arith.mulf %60, %62 : vector<2x8x8xf32>
    %64 = vector.shape_cast %63 : vector<2x8x8xf32> to vector<16x8xf32>
    %65 = arith.truncf %64 : vector<16x8xf32> to vector<16x8xbf16>
    %66 = vector.extract_strided_slice %11 {offsets = [8, 0], sizes = [8, 32], strides = [1, 1]} : vector<32x32xbf16> to vector<8x32xbf16>
    %cst_28 = arith.constant dense<0.000000e+00> : vector<16x32xf32>
    %67 = tpu.matmul %65, %66, %cst_28 {dimension_numbers = #tpu.dot_dimension_numbers<[1], [0], [0], [1], [0, 0, 1, 1], [], []>} : vector<16x8xbf16>, vector<8x32xbf16>, vector<16x32xf32> -> vector<16x32xf32>
    %68 = arith.addf %40, %67 : vector<16x32xf32>
    %69 = vector.extract_strided_slice %5 {offsets = [0, 16], sizes = [16, 8], strides = [1, 1]} : vector<16x32xf32> to vector<16x8xf32>
    %70 = vector.shape_cast %69 : vector<16x8xf32> to vector<2x8x8xf32>
    %71 = arith.truncf %70 : vector<2x8x8xf32> to vector<2x8x8xbf16>
    %72 = vector.extract_strided_slice %7 {offsets = [0, 16], sizes = [16, 8], strides = [1, 1]} : vector<16x32xf32> to vector<16x8xf32>
    %73 = vector.shape_cast %72 : vector<16x8xf32> to vector<2x8x8xf32>
    %74 = arith.truncf %73 : vector<2x8x8xf32> to vector<2x8x8xbf16>
    %75 = vector.extract_strided_slice %9 {offsets = [0, 16], sizes = [16, 8], strides = [1, 1]} : vector<16x32xf32> to vector<16x8xf32>
    %76 = vector.shape_cast %75 : vector<16x8xf32> to vector<2x8x8xf32>
    %77 = arith.truncf %76 : vector<2x8x8xf32> to vector<2x8x8xbf16>
    "tpu.trace_start"() <{level = 10 : i32, message = "bqd,bkd->bqk"}> : () -> ()
    %cst_29 = arith.constant dense<0.000000e+00> : vector<2x8x8xf32>
    %78 = tpu.matmul %71, %74, %cst_29 {dimension_numbers = #tpu.dot_dimension_numbers<[2], [2], [1], [1], [0, 0, 0, 1, 1, 1], [0], [0]>} : vector<2x8x8xbf16>, vector<2x8x8xbf16>, vector<2x8x8xf32> -> vector<2x8x8xf32>
    "tpu.trace_stop"() : () -> ()
    %79 = arith.addf %78, %10 : vector<2x8x8xf32>
    %cst_30 = arith.constant dense<0xFF800000> : vector<2x8xf32>
    %80 = vector.multi_reduction <maximumf>, %79, %cst_30 [2] : vector<2x8x8xf32> to vector<2x8xf32>
    %81 = vector.shape_cast %80 : vector<2x8xf32> to vector<2x8x1xf32>
    %82 = vector.broadcast %81 : vector<2x8x1xf32> to vector<2x8x8xf32>
    %83 = arith.subf %79, %82 : vector<2x8x8xf32>
    %84 = math.exp %83 : vector<2x8x8xf32>
    %cst_31 = arith.constant dense<0.000000e+00> : vector<2x8xf32>
    %85 = vector.multi_reduction <add>, %84, %cst_31 [2] : vector<2x8x8xf32> to vector<2x8xf32>
    %86 = vector.shape_cast %85 : vector<2x8xf32> to vector<2x8x1xf32>
    %87 = arith.truncf %84 : vector<2x8x8xf32> to vector<2x8x8xbf16>
    "tpu.trace_start"() <{level = 10 : i32, message = "bqk,bkd->bqd"}> : () -> ()
    %cst_32 = arith.constant dense<0.000000e+00> : vector<2x8x8xf32>
    %88 = tpu.matmul %87, %77, %cst_32 {dimension_numbers = #tpu.dot_dimension_numbers<[2], [1], [1], [2], [0, 0, 0, 1, 1, 2], [0], [0]>} : vector<2x8x8xbf16>, vector<2x8x8xbf16>, vector<2x8x8xf32> -> vector<2x8x8xf32>
    "tpu.trace_stop"() : () -> ()
    %89 = tpu.reciprocal %86 {approx = true} : vector<2x8x1xf32> -> vector<2x8x1xf32>
    %90 = vector.broadcast %89 : vector<2x8x1xf32> to vector<2x8x8xf32>
    %91 = arith.mulf %88, %90 : vector<2x8x8xf32>
    %92 = vector.shape_cast %91 : vector<2x8x8xf32> to vector<16x8xf32>
    %93 = arith.truncf %92 : vector<16x8xf32> to vector<16x8xbf16>
    %94 = vector.extract_strided_slice %11 {offsets = [16, 0], sizes = [8, 32], strides = [1, 1]} : vector<32x32xbf16> to vector<8x32xbf16>
    %cst_33 = arith.constant dense<0.000000e+00> : vector<16x32xf32>
    %95 = tpu.matmul %93, %94, %cst_33 {dimension_numbers = #tpu.dot_dimension_numbers<[1], [0], [0], [1], [0, 0, 1, 1], [], []>} : vector<16x8xbf16>, vector<8x32xbf16>, vector<16x32xf32> -> vector<16x32xf32>
    %96 = arith.addf %68, %95 : vector<16x32xf32>
    %97 = vector.extract_strided_slice %5 {offsets = [0, 24], sizes = [16, 8], strides = [1, 1]} : vector<16x32xf32> to vector<16x8xf32>
    %98 = vector.shape_cast %97 : vector<16x8xf32> to vector<2x8x8xf32>
    %99 = arith.truncf %98 : vector<2x8x8xf32> to vector<2x8x8xbf16>
    %100 = vector.extract_strided_slice %7 {offsets = [0, 24], sizes = [16, 8], strides = [1, 1]} : vector<16x32xf32> to vector<16x8xf32>
    %101 = vector.shape_cast %100 : vector<16x8xf32> to vector<2x8x8xf32>
    %102 = arith.truncf %101 : vector<2x8x8xf32> to vector<2x8x8xbf16>
    %103 = vector.extract_strided_slice %9 {offsets = [0, 24], sizes = [16, 8], strides = [1, 1]} : vector<16x32xf32> to vector<16x8xf32>
    %104 = vector.shape_cast %103 : vector<16x8xf32> to vector<2x8x8xf32>
    %105 = arith.truncf %104 : vector<2x8x8xf32> to vector<2x8x8xbf16>
    "tpu.trace_start"() <{level = 10 : i32, message = "bqd,bkd->bqk"}> : () -> ()
    %cst_34 = arith.constant dense<0.000000e+00> : vector<2x8x8xf32>
    %106 = tpu.matmul %99, %102, %cst_34 {dimension_numbers = #tpu.dot_dimension_numbers<[2], [2], [1], [1], [0, 0, 0, 1, 1, 1], [0], [0]>} : vector<2x8x8xbf16>, vector<2x8x8xbf16>, vector<2x8x8xf32> -> vector<2x8x8xf32>
    "tpu.trace_stop"() : () -> ()
    %107 = arith.addf %106, %10 : vector<2x8x8xf32>
    %cst_35 = arith.constant dense<0xFF800000> : vector<2x8xf32>
    %108 = vector.multi_reduction <maximumf>, %107, %cst_35 [2] : vector<2x8x8xf32> to vector<2x8xf32>
    %109 = vector.shape_cast %108 : vector<2x8xf32> to vector<2x8x1xf32>
    %110 = vector.broadcast %109 : vector<2x8x1xf32> to vector<2x8x8xf32>
    %111 = arith.subf %107, %110 : vector<2x8x8xf32>
    %112 = math.exp %111 : vector<2x8x8xf32>
    %cst_36 = arith.constant dense<0.000000e+00> : vector<2x8xf32>
    %113 = vector.multi_reduction <add>, %112, %cst_36 [2] : vector<2x8x8xf32> to vector<2x8xf32>
    %114 = vector.shape_cast %113 : vector<2x8xf32> to vector<2x8x1xf32>
    %115 = arith.truncf %112 : vector<2x8x8xf32> to vector<2x8x8xbf16>
    "tpu.trace_start"() <{level = 10 : i32, message = "bqk,bkd->bqd"}> : () -> ()
    %cst_37 = arith.constant dense<0.000000e+00> : vector<2x8x8xf32>
    %116 = tpu.matmul %115, %105, %cst_37 {dimension_numbers = #tpu.dot_dimension_numbers<[2], [1], [1], [2], [0, 0, 0, 1, 1, 2], [0], [0]>} : vector<2x8x8xbf16>, vector<2x8x8xbf16>, vector<2x8x8xf32> -> vector<2x8x8xf32>
    "tpu.trace_stop"() : () -> ()
    %117 = tpu.reciprocal %114 {approx = true} : vector<2x8x1xf32> -> vector<2x8x1xf32>
    %118 = vector.broadcast %117 : vector<2x8x1xf32> to vector<2x8x8xf32>
    %119 = arith.mulf %116, %118 : vector<2x8x8xf32>
    %120 = vector.shape_cast %119 : vector<2x8x8xf32> to vector<16x8xf32>
    %121 = arith.truncf %120 : vector<16x8xf32> to vector<16x8xbf16>
    %122 = vector.extract_strided_slice %11 {offsets = [24, 0], sizes = [8, 32], strides = [1, 1]} : vector<32x32xbf16> to vector<8x32xbf16>
    %cst_38 = arith.constant dense<0.000000e+00> : vector<16x32xf32>
    %123 = tpu.matmul %121, %122, %cst_38 {dimension_numbers = #tpu.dot_dimension_numbers<[1], [0], [0], [1], [0, 0, 1, 1], [], []>} : vector<16x8xbf16>, vector<8x32xbf16>, vector<16x32xf32> -> vector<16x32xf32>
    %124 = arith.addf %96, %123 : vector<16x32xf32>
    %125 = arith.addf %124, %0 : vector<16x32xf32>
    %cst_39 = arith.constant dense<0.000000e+00> : vector<16xf32>
    %126 = vector.multi_reduction <add>, %125, %cst_39 [1] : vector<16x32xf32> to vector<16xf32>
    %127 = vector.shape_cast %126 : vector<16xf32> to vector<16x1xf32>
    %cst_40 = arith.constant 3.200000e+01 : f32
    %128 = vector.broadcast %cst_40 : f32 to vector<16x1xf32>
    %129 = arith.divf %127, %128 : vector<16x1xf32>
    %130 = vector.broadcast %129 : vector<16x1xf32> to vector<16x32xf32>
    %131 = arith.subf %125, %130 : vector<16x32xf32>
    %132 = arith.mulf %131, %131 : vector<16x32xf32>
    %cst_41 = arith.constant dense<0.000000e+00> : vector<16xf32>
    %133 = vector.multi_reduction <add>, %132, %cst_41 [1] : vector<16x32xf32> to vector<16xf32>
    %134 = vector.shape_cast %133 : vector<16xf32> to vector<16x1xf32>
    %cst_42 = arith.constant 3.200000e+01 : f32
    %135 = vector.broadcast %cst_42 : f32 to vector<16x1xf32>
    %136 = arith.divf %134, %135 : vector<16x1xf32>
    %137 = vector.broadcast %129 : vector<16x1xf32> to vector<16x32xf32>
    %138 = arith.subf %125, %137 : vector<16x32xf32>
    %cst_43 = arith.constant 9.99999974E-6 : f32
    %139 = vector.broadcast %cst_43 : f32 to vector<16x1xf32>
    %140 = arith.addf %136, %139 : vector<16x1xf32>
    %141 = math.rsqrt %140 : vector<16x1xf32>
    %142 = vector.broadcast %141 : vector<16x1xf32> to vector<16x32xf32>
    %143 = arith.mulf %138, %142 : vector<16x32xf32>
    %c0_44 = arith.constant 0 : index
    %c0_45 = arith.constant 0 : index
    %144 = vector.load %arg9[%c0_44, %c0_45] : memref<1x32xf32, #tpu.memory_space<vmem>>, vector<1x32xf32>
    %145 = vector.broadcast %144 : vector<1x32xf32> to vector<16x32xf32>
    %146 = arith.mulf %143, %145 : vector<16x32xf32>
    %c0_46 = arith.constant 0 : index
    %c0_47 = arith.constant 0 : index
    %147 = vector.load %arg10[%c0_46, %c0_47] : memref<1x32xf32, #tpu.memory_space<vmem>>, vector<1x32xf32>
    %148 = vector.broadcast %147 : vector<1x32xf32> to vector<16x32xf32>
    %149 = arith.addf %146, %148 : vector<16x32xf32>
    %c0_48 = arith.constant 0 : index
    %c0_49 = arith.constant 0 : index
    %150 = vector.load %arg11[%c0_48, %c0_49] : memref<16x32xf32, #tpu.memory_space<vmem>>, vector<16x32xf32>
    tpu.vector_store %arg11[%c0_48, %c0_49], %149 {strides = array<i32>} : memref<16x32xf32, #tpu.memory_space<vmem>>, vector<16x32xf32>,
    return
  }
  func.func @transform_0(%arg0: i32) -> (i32, i32) {
    %c0_i32 = arith.constant 0 : i32
    %c0_i32_0 = arith.constant 0 : i32
    return %arg0, %c0_i32 : i32, i32
  }
  func.func @transform_1(%arg0: i32) -> (i32, i32) {
    %c0_i32 = arith.constant 0 : i32
    %c0_i32_0 = arith.constant 0 : i32
    return %arg0, %c0_i32 : i32, i32
  }
  func.func @transform_2(%arg0: i32) -> (i32, i32) {
    %c0_i32 = arith.constant 0 : i32
    %c0_i32_0 = arith.constant 0 : i32
    return %arg0, %c0_i32 : i32, i32
  }
  func.func @transform_3(%arg0: i32) -> (i32, i32, i32) {
    %c0_i32 = arith.constant 0 : i32
    %c0_i32_0 = arith.constant 0 : i32
    %c0_i32_1 = arith.constant 0 : i32
    return %arg0, %c0_i32, %c0_i32_0 : i32, i32, i32
  }
  func.func @transform_4(%arg0: i32) -> (i32, i32) {
    %c0_i32 = arith.constant 0 : i32
    %c0_i32_0 = arith.constant 0 : i32
    %c0_i32_1 = arith.constant 0 : i32
    return %c0_i32, %c0_i32_0 : i32, i32
  }
  func.func @transform_5(%arg0: i32) -> (i32, i32) {
    %c0_i32 = arith.constant 0 : i32
    %c0_i32_0 = arith.constant 0 : i32
    %c0_i32_1 = arith.constant 0 : i32
    return %c0_i32, %c0_i32_0 : i32, i32
  }
  func.func @transform_6(%arg0: i32) -> (i32, i32) {
    %c0_i32 = arith.constant 0 : i32
    %c0_i32_0 = arith.constant 0 : i32
    %c0_i32_1 = arith.constant 0 : i32
    return %c0_i32, %c0_i32_0 : i32, i32
  }
  func.func @transform_7(%arg0: i32) -> (i32, i32) {
    %c0_i32 = arith.constant 0 : i32
    %c0_i32_0 = arith.constant 0 : i32
    %c0_i32_1 = arith.constant 0 : i32
    return %c0_i32, %c0_i32_0 : i32, i32
  }
  func.func @transform_8(%arg0: i32) -> (i32, i32) {
    %c0_i32 = arith.constant 0 : i32
    %c0_i32_0 = arith.constant 0 : i32
    %c0_i32_1 = arith.constant 0 : i32
    return %c0_i32, %c0_i32_0 : i32, i32
  }
  func.func @transform_9(%arg0: i32) -> (i32, i32) {
    %c0_i32 = arith.constant 0 : i32
    %c0_i32_0 = arith.constant 0 : i32
    %c0_i32_1 = arith.constant 0 : i32
    return %c0_i32, %c0_i32_0 : i32, i32
  }
  func.func @transform_10(%arg0: i32) -> (i32, i32) {
    %c0_i32 = arith.constant 0 : i32
    %c0_i32_0 = arith.constant 0 : i32
    return %arg0, %c0_i32 : i32, i32
  }
}

</mosaic_0001>

<llo_original>
// kernel: tpu_custom_call.1
$region0: #{tpu_custom_call.1}
  #allocation0 [shape = 'u32[]', space=smem, size = 0x4, offset = 0x4, fixed_abs, tag = 'smem constant byte address 0x4 - core index']
  #allocation1 [shape = 'u32[144,128]{1,0:T(1,128)}', space=vmem, size = 0x12000, scoped, tag = 'internal scratch']
  %s0 = inlined_call_operand.hbm [shape: f32[16,32], index: 0, kind: input, shape index: {}]
  %s1 = inlined_call_operand.hbm [shape: bf16[16,32], index: 1, kind: input, shape index: {}]
  %s2 = inlined_call_operand.hbm [shape: bf16[16,32], index: 2, kind: input, shape index: {}]
  %s3 = inlined_call_operand.hbm [shape: f32[2,8,8], index: 3, kind: input, shape index: {}]
  %s4 = inlined_call_operand.hbm [shape: bf16[32,32], index: 4, kind: input, shape index: {}]
  %s5 = inlined_call_operand.vmem [shape: bf16[32,32], index: 5, kind: input, shape index: {}]
  %s6 = inlined_call_operand.hbm [shape: bf16[32,32], index: 6, kind: input, shape index: {}]
  %s7 = inlined_call_operand.hbm [shape: bf16[32,32], index: 7, kind: input, shape index: {}]
  %s8 = inlined_call_operand.vmem [shape: f32[1,32], index: 8, kind: input, shape index: {}]
  %s9 = inlined_call_operand.vmem [shape: f32[1,32], index: 9, kind: input, shape index: {}]
  %s10 = inlined_call_operand.hbm [shape: f32[16,32], index: 10, kind: output, shape index: {}]
  %s11 = sld [smem:[#allocation0]]
  $region78: #{tpu_custom_call.1} parent=0
    _
  %s13 = ssub.s32 1, %s11
  %s14 = scalar_select 0, %s13, %s11
  $region1: #{tpu_custom_call.1} parent=0
    #allocation2 [shape = 'u8[8192]{0}', space=vmem, size = 0x2000, scoped, tag = 'input window, operand 0, single buffered']
    #allocation3 [shape = 's32[1]{0}', space=sflag, size = 0x4, scoped, tag = 'scoped memory for tpu_custom_call.1']
    #allocation4 [shape = 's32[1]{0}', space=sflag, size = 0x4, scoped, tag = 'scoped memory for tpu_custom_call.1']
    #allocation5 [shape = 'u8[4096]{0}', space=vmem, size = 0x1000, scoped, tag = 'input window, operand 1, single buffered']
    #allocation6 [shape = 's32[1]{0}', space=sflag, size = 0x4, scoped, tag = 'scoped memory for tpu_custom_call.1']
    #allocation7 [shape = 'u8[4096]{0}', space=vmem, size = 0x1000, scoped, tag = 'input window, operand 2, single buffered']
    #allocation8 [shape = 'u8[8192]{0}', space=vmem, size = 0x2000, scoped, tag = 'input window, operand 3, single buffered']
    #allocation9 [shape = 's32[1]{0}', space=sflag, size = 0x4, scoped, tag = 'scoped memory for tpu_custom_call.1']
    #allocation10 [shape = 'u8[8192]{0}', space=vmem, size = 0x2000, scoped, tag = 'input window, operand 4, single buffered']
    #allocation11 [shape = 'u8[8192]{0}', space=vmem, size = 0x2000, scoped, tag = 'input window, operand 6, single buffered']
    #allocation12 [shape = 's32[1]{0}', space=sflag, size = 0x4, scoped, tag = 'scoped memory for tpu_custom_call.1']
    #allocation13 [shape = 'u8[8192]{0}', space=vmem, size = 0x2000, scoped, tag = 'input window, operand 7, single buffered']
    #allocation14 [shape = 'u8[8192]{0}', space=vmem, size = 0x2000, scoped, tag = 'output window, operand 0, single buffered']
    %15 = vsyncpa [#allocation3], 0
    %16 = vsyncpa [#allocation6], 0
    %17 = vsyncpa [#allocation9], 0
    %18 = vsyncpa [#allocation12], 0
    %19 = vsyncpa [#allocation4], 0
    // Predicated region
    $region2: #{tpu_custom_call.1} parent=1 // pred_check
      _
    $region3: #{tpu_custom_call.1} parent=1 // pred_check_branch
      %21 = sbr.rel (0) target = $region5
    $region4: #{tpu_custom_call.1} parent=1 // pred_region
      %s23 = ssub.s32 256, 256
      %24 = vsyncadd [#allocation3], %s23
      %s25 = sshll.u32 [#allocation2], 4
      %s26 = int_to_ptr.vmem [resolvable:$true] %s25
      %31 = dma.hbm_to_vmem [thread:$0]  %s0, 256, %s26, [#allocation3], 128, 128, 8
    $region5: #{tpu_custom_call.1} parent=1 // pred_fallthru
      _
    // Predicated region
    $region6: #{tpu_custom_call.1} parent=1 // pred_check
      _
    $region7: #{tpu_custom_call.1} parent=1 // pred_check_branch
      %33 = sbr.rel (0) target = $region9
    $region8: #{tpu_custom_call.1} parent=1 // pred_region
      %s35 = ssub.s32 128, 128
      %36 = vsyncadd [#allocation6], %s35
      %s37 = sshll.u32 [#allocation5], 4
      %s38 = int_to_ptr.vmem [resolvable:$true] %s37
      %43 = dma.hbm_to_vmem [thread:$0]  %s1, 128, %s38, [#allocation6], 64, 64, 4
    $region9: #{tpu_custom_call.1} parent=1 // pred_fallthru
      _
    // Predicated region
    $region10: #{tpu_custom_call.1} parent=1 // pred_check
      _
    $region11: #{tpu_custom_call.1} parent=1 // pred_check_branch
      %45 = sbr.rel (0) target = $region13
    $region12: #{tpu_custom_call.1} parent=1 // pred_region
      %s47 = ssub.s32 128, 128
      %48 = vsyncadd [#allocation6], %s47
      %s49 = sshll.u32 [#allocation7], 4
      %s50 = int_to_ptr.vmem [resolvable:$true] %s49
      %55 = dma.hbm_to_vmem [thread:$0]  %s2, 128, %s50, [#allocation6], 64, 64, 4
    $region13: #{tpu_custom_call.1} parent=1 // pred_fallthru
      _
    // Predicated region
    $region14: #{tpu_custom_call.1} parent=1 // pred_check
      _
    $region15: #{tpu_custom_call.1} parent=1 // pred_check_branch
      %57 = sbr.rel (0) target = $region17
    $region16: #{tpu_custom_call.1} parent=1 // pred_region
      %s59 = ssub.s32 256, 256
      %60 = vsyncadd [#allocation9], %s59
      %s61 = sshll.u32 [#allocation8], 4
      %s62 = int_to_ptr.vmem [resolvable:$true] %s61
      %67 = dma.hbm_to_vmem [thread:$0]  %s3, 256, %s62, [#allocation9], 128, 128, 8
    $region17: #{tpu_custom_call.1} parent=1 // pred_fallthru
      _
    // Predicated region
    $region18: #{tpu_custom_call.1} parent=1 // pred_check
      _
    $region19: #{tpu_custom_call.1} parent=1 // pred_check_branch
      %69 = sbr.rel (0) target = $region21
    $region20: #{tpu_custom_call.1} parent=1 // pred_region
      %s71 = ssub.s32 256, 256
      %72 = vsyncadd [#allocation9], %s71
      %s73 = sshll.u32 [#allocation10], 4
      %s74 = int_to_ptr.vmem [resolvable:$true] %s73
      %79 = dma.hbm_to_vmem [thread:$0]  %s4, 256, %s74, [#allocation9], 64, 64, 4
    $region21: #{tpu_custom_call.1} parent=1 // pred_fallthru
      _
    // Predicated region
    $region22: #{tpu_custom_call.1} parent=1 // pred_check
      _
    $region23: #{tpu_custom_call.1} parent=1 // pred_check_branch
      %81 = sbr.rel (0) target = $region25
    $region24: #{tpu_custom_call.1} parent=1 // pred_region
      _
    $region25: #{tpu_custom_call.1} parent=1 // pred_fallthru
      _
    // Predicated region
    $region26: #{tpu_custom_call.1} parent=1 // pred_check
      _
    $region27: #{tpu_custom_call.1} parent=1 // pred_check_branch
      %83 = sbr.rel (0) target = $region29
    $region28: #{tpu_custom_call.1} parent=1 // pred_region
      %s85 = ssub.s32 256, 256
      %86 = vsyncadd [#allocation12], %s85
      %s87 = sshll.u32 [#allocation11], 4
      %s88 = int_to_ptr.vmem [resolvable:$true] %s87
      %93 = dma.hbm_to_vmem [thread:$0]  %s6, 256, %s88, [#allocation12], 64, 64, 4
    $region29: #{tpu_custom_call.1} parent=1 // pred_fallthru
      _
    // Predicated region
    $region30: #{tpu_custom_call.1} parent=1 // pred_check
      _
    $region31: #{tpu_custom_call.1} parent=1 // pred_check_branch
      %95 = sbr.rel (0) target = $region33
    $region32: #{tpu_custom_call.1} parent=1 // pred_region
      %s97 = ssub.s32 256, 256
      %98 = vsyncadd [#allocation12], %s97
      %s99 = sshll.u32 [#allocation13], 4
      %s100 = int_to_ptr.vmem [resolvable:$true] %s99
      %105 = dma.hbm_to_vmem [thread:$0]  %s7, 256, %s100, [#allocation12], 64, 64, 4
    $region33: #{tpu_custom_call.1} parent=1 // pred_fallthru
      _
    // Predicated region
    $region34: #{tpu_custom_call.1} parent=1 // pred_check
      _
    $region35: #{tpu_custom_call.1} parent=1 // pred_check_branch
      %107 = sbr.rel (0) target = $region37
    $region36: #{tpu_custom_call.1} parent=1 // pred_region
      _
    $region37: #{tpu_custom_call.1} parent=1 // pred_fallthru
      _
    // Predicated region
    $region38: #{tpu_custom_call.1} parent=1 // pred_check
      _
    $region39: #{tpu_custom_call.1} parent=1 // pred_check_branch
      %109 = sbr.rel (0) target = $region41
    $region40: #{tpu_custom_call.1} parent=1 // pred_region
      _
    $region41: #{tpu_custom_call.1} parent=1 // pred_fallthru
      _
    // Predicated region
    $region42: #{tpu_custom_call.1} parent=1 // pred_check
      _
    $region43: #{tpu_custom_call.1} parent=1 // pred_check_branch
      %111 = sbr.rel (0) target = $region45
    $region44: #{tpu_custom_call.1} parent=1 // pred_region
      %112 = dma.done [#allocation3], 256
    $region45: #{tpu_custom_call.1} parent=1 // pred_fallthru
      _
    // Predicated region
    $region46: #{tpu_custom_call.1} parent=1 // pred_check
      _
    $region47: #{tpu_custom_call.1} parent=1 // pred_check_branch
      %114 = sbr.rel (0) target = $region49
    $region48: #{tpu_custom_call.1} parent=1 // pred_region
      %115 = dma.done [#allocation6], 128
    $region49: #{tpu_custom_call.1} parent=1 // pred_fallthru
      _
    // Predicated region
    $region50: #{tpu_custom_call.1} parent=1 // pred_check
      _
    $region51: #{tpu_custom_call.1} parent=1 // pred_check_branch
      %117 = sbr.rel (0) target = $region53
    $region52: #{tpu_custom_call.1} parent=1 // pred_region
      %118 = dma.done [#allocation6], 128
    $region53: #{tpu_custom_call.1} parent=1 // pred_fallthru
      _
    // Predicated region
    $region54: #{tpu_custom_call.1} parent=1 // pred_check
      _
    $region55: #{tpu_custom_call.1} parent=1 // pred_check_branch
      %120 = sbr.rel (0) target = $region57
    $region56: #{tpu_custom_call.1} parent=1 // pred_region
      %121 = dma.done [#allocation9], 256
    $region57: #{tpu_custom_call.1} parent=1 // pred_fallthru
      _
    // Predicated region
    $region58: #{tpu_custom_call.1} parent=1 // pred_check
      _
    $region59: #{tpu_custom_call.1} parent=1 // pred_check_branch
      %123 = sbr.rel (0) target = $region61
    $region60: #{tpu_custom_call.1} parent=1 // pred_region
      %124 = dma.done [#allocation9], 256
    $region61: #{tpu_custom_call.1} parent=1 // pred_fallthru
      _
    // Predicated region
    $region62: #{tpu_custom_call.1} parent=1 // pred_check
      _
    $region63: #{tpu_custom_call.1} parent=1 // pred_check_branch
      %126 = sbr.rel (0) target = $region65
    $region64: #{tpu_custom_call.1} parent=1 // pred_region
      %127 = dma.done [#allocation12], 256
    $region65: #{tpu_custom_call.1} parent=1 // pred_fallthru
      _
    // Predicated region
    $region66: #{tpu_custom_call.1} parent=1 // pred_check
      _
    $region67: #{tpu_custom_call.1} parent=1 // pred_check_branch
      %129 = sbr.rel (0) target = $region69
    $region68: #{tpu_custom_call.1} parent=1 // pred_region
      %130 = dma.done [#allocation12], 256
    $region69: #{tpu_custom_call.1} parent=1 // pred_fallthru
      _
    %v132 = vld [vmem:[#allocation2] sm:$0xff]
    %v133 = vld [vmem:[#allocation2 + $0x8] sm:$0xff]
    %v134 = vpack.c.bf16 %v133, %v132
    %v135 = vld [vmem:[#allocation5] sm:$0xf]
    %v136 = vld [vmem:[#allocation5 + $0x4] sm:$0xf]
    %v137 = vld [vmem:[#allocation7] sm:$0xf]
    %v138 = vld [vmem:[#allocation7 + $0x4] sm:$0xf]
    %v139 = vld [vmem:[#allocation10] sm:$0xf]
    %v140 = vld [vmem:[#allocation10 + $0x4] sm:$0xf]
    %v141 = vld [vmem:[#allocation10 + $0x8] sm:$0xf]
    %v142 = vld [vmem:[#allocation10 + $0xc] sm:$0xf]
    %v147 = vunpack.c.l.b16 %v139
    %v148 = vunpack.c.l.b16 %v140
    %v149 = vunpack.c.l.b16 %v141
    %v150 = vunpack.c.l.b16 %v142
    %v151 = vpack.c.b16 %v148, %v147
    %v152 = vpack.c.b16 %v150, %v149
    %vm155 = vcmask 261120
    %v157 = vsel %vm155, %v134, 0
    %159 = vmatprep.subr.bf16.mxu0 0
    %160 = vmatpush1.bf16.msra.mxu0 %v151
    %161 = vmatprep.subr.bf16.mxu0 0
    %162 = vmatpush1.bf16.msra.mxu0 %v152
    %163 = vmatprep.subr.bf16.mxu0 0
    %164 = vmatpush1.bf16.msra.mxu0 0
    %165 = vmatprep.subr.bf16.mxu0 0
    %166 = vmatpush1.bf16.msra.mxu0 0
    %167 = vmatprep.subr.bf16.mxu0 0
    %168 = vmatpush1.bf16.msra.mxu0 0
    %169 = vmatprep.subr.bf16.mxu0 0
    %170 = vmatpush1.bf16.msra.mxu0 0
    %171 = vmatprep.subr.bf16.mxu0 0
    %172 = vmatpush1.bf16.msra.mxu0 0
    %173 = vmatprep.subr.bf16.mxu0 0
    %174 = vmatpush1.bf16.msra.mxu0 0
    %175 = vmatprep.subr.bf16.mxu0 0
    %176 = vmatpush1.bf16.msra.mxu0 0
    %177 = vmatprep.subr.bf16.mxu0 0
    %178 = vmatpush1.bf16.msra.mxu0 0
    %179 = vmatprep.subr.bf16.mxu0 0
    %180 = vmatpush1.bf16.msra.mxu0 0
    %181 = vmatprep.subr.bf16.mxu0 0
    %182 = vmatpush1.bf16.msra.mxu0 0
    %183 = vmatprep.subr.bf16.mxu0 0
    %184 = vmatpush1.bf16.msra.mxu0 0
    %185 = vmatprep.subr.bf16.mxu0 0
    %186 = vmatpush1.bf16.msra.mxu0 0
    %187 = vmatprep.subr.bf16.mxu0 0
    %188 = vmatpush1.bf16.msra.mxu0 0
    %189 = vmatprep.subr.bf16.mxu0 0
    %190 = vmatpush1.bf16.msra.mxu0 0
    %191 = vmatprep.mubr.bf16.mxu0 0
    %192 = vmatmul.mubr.bf16.gmra.mrb[0].mxu0 %v157
    %v193 = vpop.f32.mrb[0].mxu0
    %v194 = vadd.f32 0.0, %v193
    %v195 = vpop.f32.mrb[0].mxu0
    %v196 = vpop.f32.mrb[0].mxu0
    %v197 = vadd.f32 0.0, %v196
    %v198 = vpop.f32.mrb[0].mxu0
    %199 = vdwg.mxu0
    %v200 = vld [vmem:[%s5] sm:$0xf]
    %v201 = vld [vmem:[%s5 + $0x4] sm:$0xf]
    %v202 = vld [vmem:[%s5 + $0x8] sm:$0xf]
    %v203 = vld [vmem:[%s5 + $0xc] sm:$0xf]
    %v206 = vunpack.c.l.b16 %v135
    %v207 = vunpack.c.l.b16 %v136
    %v208 = vpack.c.b16 %v207, %v206
    %v213 = vunpack.c.l.b16 %v200
    %v214 = vunpack.c.l.b16 %v201
    %v215 = vunpack.c.l.b16 %v202
    %v216 = vunpack.c.l.b16 %v203
    %v217 = vpack.c.b16 %v214, %v213
    %v218 = vpack.c.b16 %v216, %v215
    %v222 = vsel %vm155, %v208, 0
    %224 = vmatprep.subr.bf16.mxu0 0
    %225 = vmatpush1.bf16.msra.mxu0 %v217
    %226 = vmatprep.subr.bf16.mxu0 0
    %227 = vmatpush1.bf16.msra.mxu0 %v218
    %228 = vmatprep.subr.bf16.mxu0 0
    %229 = vmatpush1.bf16.msra.mxu0 0
    %230 = vmatprep.subr.bf16.mxu0 0
    %231 = vmatpush1.bf16.msra.mxu0 0
    %232 = vmatprep.subr.bf16.mxu0 0
    %233 = vmatpush1.bf16.msra.mxu0 0
    %234 = vmatprep.subr.bf16.mxu0 0
    %235 = vmatpush1.bf16.msra.mxu0 0
    %236 = vmatprep.subr.bf16.mxu0 0
    %237 = vmatpush1.bf16.msra.mxu0 0
    %238 = vmatprep.subr.bf16.mxu0 0
    %239 = vmatpush1.bf16.msra.mxu0 0
    %240 = vmatprep.subr.bf16.mxu0 0
    %241 = vmatpush1.bf16.msra.mxu0 0
    %242 = vmatprep.subr.bf16.mxu0 0
    %243 = vmatpush1.bf16.msra.mxu0 0
    %244 = vmatprep.subr.bf16.mxu0 0
    %245 = vmatpush1.bf16.msra.mxu0 0
    %246 = vmatprep.subr.bf16.mxu0 0
    %247 = vmatpush1.bf16.msra.mxu0 0
    %248 = vmatprep.subr.bf16.mxu0 0
    %249 = vmatpush1.bf16.msra.mxu0 0
    %250 = vmatprep.subr.bf16.mxu0 0
    %251 = vmatpush1.bf16.msra.mxu0 0
    %252 = vmatprep.subr.bf16.mxu0 0
    %253 = vmatpush1.bf16.msra.mxu0 0
    %254 = vmatprep.subr.bf16.mxu0 0
    %255 = vmatpush1.bf16.msra.mxu0 0
    %256 = vmatprep.mubr.bf16.mxu0 0
    %257 = vmatmul.mubr.bf16.gmra.mrb[0].mxu0 %v222
    %v258 = vpop.f32.mrb[0].mxu0
    %v259 = vadd.f32 0.0, %v258
    %v260 = vpop.f32.mrb[0].mxu0
    %v261 = vpop.f32.mrb[0].mxu0
    %v262 = vadd.f32 0.0, %v261
    %v263 = vpop.f32.mrb[0].mxu0
    %264 = vdwg.mxu0
    %v265 = vld [vmem:[#allocation11] sm:$0xf]
    %v266 = vld [vmem:[#allocation11 + $0x4] sm:$0xf]
    %v267 = vld [vmem:[#allocation11 + $0x8] sm:$0xf]
    %v268 = vld [vmem:[#allocation11 + $0xc] sm:$0xf]
    %v271 = vunpack.c.l.b16 %v137
    %v272 = vunpack.c.l.b16 %v138
    %v273 = vpack.c.b16 %v272, %v271
    %v278 = vunpack.c.l.b16 %v265
    %v279 = vunpack.c.l.b16 %v266
    %v280 = vunpack.c.l.b16 %v267
    %v281 = vunpack.c.l.b16 %v268
    %v282 = vpack.c.b16 %v279, %v278
    %v283 = vpack.c.b16 %v281, %v280
    %v287 = vsel %vm155, %v273, 0
    %289 = vmatprep.subr.bf16.mxu0 0
    %290 = vmatpush1.bf16.msra.mxu0 %v282
    %291 = vmatprep.subr.bf16.mxu0 0
    %292 = vmatpush1.bf16.msra.mxu0 %v283
    %293 = vmatprep.subr.bf16.mxu0 0
    %294 = vmatpush1.bf16.msra.mxu0 0
    %295 = vmatprep.subr.bf16.mxu0 0
    %296 = vmatpush1.bf16.msra.mxu0 0
    %297 = vmatprep.subr.bf16.mxu0 0
    %298 = vmatpush1.bf16.msra.mxu0 0
    %299 = vmatprep.subr.bf16.mxu0 0
    %300 = vmatpush1.bf16.msra.mxu0 0
    %301 = vmatprep.subr.bf16.mxu0 0
    %302 = vmatpush1.bf16.msra.mxu0 0
    %303 = vmatprep.subr.bf16.mxu0 0
    %304 = vmatpush1.bf16.msra.mxu0 0
    %305 = vmatprep.subr.bf16.mxu0 0
    %306 = vmatpush1.bf16.msra.mxu0 0
    %307 = vmatprep.subr.bf16.mxu0 0
    %308 = vmatpush1.bf16.msra.mxu0 0
    %309 = vmatprep.subr.bf16.mxu0 0
    %310 = vmatpush1.bf16.msra.mxu0 0
    %311 = vmatprep.subr.bf16.mxu0 0
    %312 = vmatpush1.bf16.msra.mxu0 0
    %313 = vmatprep.subr.bf16.mxu0 0
    %314 = vmatpush1.bf16.msra.mxu0 0
    %315 = vmatprep.subr.bf16.mxu0 0
    %316 = vmatpush1.bf16.msra.mxu0 0
    %317 = vmatprep.subr.bf16.mxu0 0
    %318 = vmatpush1.bf16.msra.mxu0 0
    %319 = vmatprep.subr.bf16.mxu0 0
    %320 = vmatpush1.bf16.msra.mxu0 0
    %321 = vmatprep.mubr.bf16.mxu0 0
    %322 = vmatmul.mubr.bf16.gmra.mrb[0].mxu0 %v287
    %v323 = vpop.f32.mrb[0].mxu0
    %v324 = vadd.f32 0.0, %v323
    %v325 = vpop.f32.mrb[0].mxu0
    %v326 = vpop.f32.mrb[0].mxu0
    %v327 = vadd.f32 0.0, %v326
    %v328 = vpop.f32.mrb[0].mxu0
    %329 = vdwg.mxu0
    %v330 = vld [vmem:[#allocation8] sm:$0xff]
    %v331 = vld [vmem:[#allocation8 + $0x8] sm:$0xff]
    %v332 = vld [vmem:[#allocation13] sm:$0xf]
    %v333 = vld [vmem:[#allocation13 + $0x4] sm:$0xf]
    %v334 = vld [vmem:[#allocation13 + $0x8] sm:$0xf]
    %v335 = vld [vmem:[#allocation13 + $0xc] sm:$0xf]
    %v336 = vpack.c.bf16 %v194, %v194
    %v337 = vpack.c.bf16 %v197, %v197
    %v338 = vpack.c.bf16 %v259, %v259
    %v339 = vpack.c.bf16 %v262, %v262
    %v340 = vpack.c.bf16 %v324, %v324
    %v341 = vpack.c.bf16 %v327, %v327
    %vm342 = vcmask 64512
    %v344 = vsel %vm342, %v336, 0
    %v347 = vsel %vm342, %v338, 0
    %349 = vmatprep.subr.bf16.mxu0 0
    %350 = vmatpush1.bf16.xpose.msra.mxu0 %v347
    %351 = vmatprep.subr.bf16.mxu0 0
    %352 = vmatpush1.bf16.xpose.msra.mxu0 0
    %353 = vmatprep.subr.bf16.mxu0 0
    %354 = vmatpush1.bf16.xpose.msra.mxu0 0
    %355 = vmatprep.subr.bf16.mxu0 0
    %356 = vmatpush1.bf16.xpose.msra.mxu0 0
    %357 = vmatprep.subr.bf16.mxu0 0
    %358 = vmatpush1.bf16.xpose.msra.mxu0 0
    %359 = vmatprep.subr.bf16.mxu0 0
    %360 = vmatpush1.bf16.xpose.msra.mxu0 0
    %361 = vmatprep.subr.bf16.mxu0 0
    %362 = vmatpush1.bf16.xpose.msra.mxu0 0
    %363 = vmatprep.subr.bf16.mxu0 0
    %364 = vmatpush1.bf16.xpose.msra.mxu0 0
    %365 = vmatprep.subr.bf16.mxu0 0
    %366 = vmatpush1.bf16.xpose.msra.mxu0 0
    %367 = vmatprep.subr.bf16.mxu0 0
    %368 = vmatpush1.bf16.xpose.msra.mxu0 0
    %369 = vmatprep.subr.bf16.mxu0 0
    %370 = vmatpush1.bf16.xpose.msra.mxu0 0
    %371 = vmatprep.subr.bf16.mxu0 0
    %372 = vmatpush1.bf16.xpose.msra.mxu0 0
    %373 = vmatprep.subr.bf16.mxu0 0
    %374 = vmatpush1.bf16.xpose.msra.mxu0 0
    %375 = vmatprep.subr.bf16.mxu0 0
    %376 = vmatpush1.bf16.xpose.msra.mxu0 0
    %377 = vmatprep.subr.bf16.mxu0 0
    %378 = vmatpush1.bf16.xpose.msra.mxu0 0
    %379 = vmatprep.subr.bf16.mxu0 0
    %380 = vmatpush1.bf16.xpose.msra.mxu0 0
    %381 = vmatprep.mubr.bf16.mxu0 0
    %382 = vmatmul.mubr.bf16.gmra.mrb[0].mxu0 %v344
    %v383 = vpop.f32.mrb[0].mxu0
    %v384 = vadd.f32 %v330, %v383
    %v385 = vpop.f32.mrb[0].mxu0
    %v386 = vpop.f32.mrb[0].mxu0
    %v387 = vpop.f32.mrb[0].mxu0
    %388 = vdwg.mxu0
    %v390 = vsel %vm342, %v337, 0
    %v393 = vsel %vm342, %v339, 0
    %395 = vmatprep.subr.bf16.mxu0 0
    %396 = vmatpush1.bf16.xpose.msra.mxu0 %v393
    %397 = vmatprep.subr.bf16.mxu0 0
    %398 = vmatpush1.bf16.xpose.msra.mxu0 0
    %399 = vmatprep.subr.bf16.mxu0 0
    %400 = vmatpush1.bf16.xpose.msra.mxu0 0
    %401 = vmatprep.subr.bf16.mxu0 0
    %402 = vmatpush1.bf16.xpose.msra.mxu0 0
    %403 = vmatprep.subr.bf16.mxu0 0
    %404 = vmatpush1.bf16.xpose.msra.mxu0 0
    %405 = vmatprep.subr.bf16.mxu0 0
    %406 = vmatpush1.bf16.xpose.msra.mxu0 0
    %407 = vmatprep.subr.bf16.mxu0 0
    %408 = vmatpush1.bf16.xpose.msra.mxu0 0
    %409 = vmatprep.subr.bf16.mxu0 0
    %410 = vmatpush1.bf16.xpose.msra.mxu0 0
    %411 = vmatprep.subr.bf16.mxu0 0
    %412 = vmatpush1.bf16.xpose.msra.mxu0 0
    %413 = vmatprep.subr.bf16.mxu0 0
    %414 = vmatpush1.bf16.xpose.msra.mxu0 0
    %415 = vmatprep.subr.bf16.mxu0 0
    %416 = vmatpush1.bf16.xpose.msra.mxu0 0
    %417 = vmatprep.subr.bf16.mxu0 0
    %418 = vmatpush1.bf16.xpose.msra.mxu0 0
    %419 = vmatprep.subr.bf16.mxu0 0
    %420 = vmatpush1.bf16.xpose.msra.mxu0 0
    %421 = vmatprep.subr.bf16.mxu0 0
    %422 = vmatpush1.bf16.xpose.msra.mxu0 0
    %423 = vmatprep.subr.bf16.mxu0 0
    %424 = vmatpush1.bf16.xpose.msra.mxu0 0
    %425 = vmatprep.subr.bf16.mxu0 0
    %426 = vmatpush1.bf16.xpose.msra.mxu0 0
    %427 = vmatprep.mubr.bf16.mxu0 0
    %428 = vmatmul.mubr.bf16.gmra.mrb[0].mxu0 %v390
    %v429 = vpop.f32.mrb[0].mxu0
    %v430 = vadd.f32 %v331, %v429
    %v431 = vpop.f32.mrb[0].mxu0
    %v432 = vpop.f32.mrb[0].mxu0
    %v433 = vpop.f32.mrb[0].mxu0
    %434 = vdwg.mxu0
    %v435 = vsel %vm342, %v384, -inf
    %436 = vmax.xlane.f32.xlu0 %v435
    %v437 = vpop.xlane.xlu0 %436
    %v438 = vsel %vm342, %v430, -inf
    %439 = vmax.xlane.f32.xlu0 %v438
    %v440 = vpop.xlane.xlu0 %439
    %v441 = vsub.f32 %v384, %v437
    %v442 = vsub.f32 %v430, %v440
    %v443 = vmul.f32 %v441, 1.442695
    %v444 = vpow.pop %v443
    %v445 = vmul.f32 %v442, 1.442695
    %v446 = vpow.pop %v445
    %v447 = vsel %vm342, %v444, 0.0
    %448 = vadd.xlane.f32.xlu0 %v447
    %v449 = vpop.xlane.xlu0 %448
    %v450 = vsel %vm342, %v446, 0.0
    %451 = vadd.xlane.f32.xlu0 %v450
    %v452 = vpop.xlane.xlu0 %451
    %v453 = vpack.c.bf16 %v444, %v444
    %v454 = vpack.c.bf16 %v446, %v446
    %v456 = vsel %vm342, %v453, 0
    %vm458 = vcmask 1043456
    %v460 = vsel %vm458, %v340, 0
    %462 = vmatprep.subr.bf16.mxu0 0
    %463 = vmatpush1.bf16.msra.mxu0 %v460
    %464 = vmatprep.subr.bf16.mxu0 0
    %465 = vmatpush1.bf16.msra.mxu0 0
    %466 = vmatprep.subr.bf16.mxu0 0
    %467 = vmatpush1.bf16.msra.mxu0 0
    %468 = vmatprep.subr.bf16.mxu0 0
    %469 = vmatpush1.bf16.msra.mxu0 0
    %470 = vmatprep.subr.bf16.mxu0 0
    %471 = vmatpush1.bf16.msra.mxu0 0
    %472 = vmatprep.subr.bf16.mxu0 0
    %473 = vmatpush1.bf16.msra.mxu0 0
    %474 = vmatprep.subr.bf16.mxu0 0
    %475 = vmatpush1.bf16.msra.mxu0 0
    %476 = vmatprep.subr.bf16.mxu0 0
    %477 = vmatpush1.bf16.msra.mxu0 0
    %478 = vmatprep.subr.bf16.mxu0 0
    %479 = vmatpush1.bf16.msra.mxu0 0
    %480 = vmatprep.subr.bf16.mxu0 0
    %481 = vmatpush1.bf16.msra.mxu0 0
    %482 = vmatprep.subr.bf16.mxu0 0
    %483 = vmatpush1.bf16.msra.mxu0 0
    %484 = vmatprep.subr.bf16.mxu0 0
    %485 = vmatpush1.bf16.msra.mxu0 0
    %486 = vmatprep.subr.bf16.mxu0 0
    %487 = vmatpush1.bf16.msra.mxu0 0
    %488 = vmatprep.subr.bf16.mxu0 0
    %489 = vmatpush1.bf16.msra.mxu0 0
    %490 = vmatprep.subr.bf16.mxu0 0
    %491 = vmatpush1.bf16.msra.mxu0 0
    %492 = vmatprep.subr.bf16.mxu0 0
    %493 = vmatpush1.bf16.msra.mxu0 0
    %494 = vmatprep.mubr.bf16.mxu0 0
    %495 = vmatmul.mubr.bf16.gmra.mrb[0].mxu0 %v456
    %v496 = vpop.f32.mrb[0].mxu0
    %v497 = vadd.f32 0.0, %v496
    %v498 = vpop.f32.mrb[0].mxu0
    %v499 = vpop.f32.mrb[0].mxu0
    %v500 = vpop.f32.mrb[0].mxu0
    %501 = vdwg.mxu0
    %v503 = vsel %vm342, %v454, 0
    %v506 = vsel %vm458, %v341, 0
    %508 = vmatprep.subr.bf16.mxu0 0
    %509 = vmatpush1.bf16.msra.mxu0 %v506
    %510 = vmatprep.subr.bf16.mxu0 0
    %511 = vmatpush1.bf16.msra.mxu0 0
    %512 = vmatprep.subr.bf16.mxu0 0
    %513 = vmatpush1.bf16.msra.mxu0 0
    %514 = vmatprep.subr.bf16.mxu0 0
    %515 = vmatpush1.bf16.msra.mxu0 0
    %516 = vmatprep.subr.bf16.mxu0 0
    %517 = vmatpush1.bf16.msra.mxu0 0
    %518 = vmatprep.subr.bf16.mxu0 0
    %519 = vmatpush1.bf16.msra.mxu0 0
    %520 = vmatprep.subr.bf16.mxu0 0
    %521 = vmatpush1.bf16.msra.mxu0 0
    %522 = vmatprep.subr.bf16.mxu0 0
    %523 = vmatpush1.bf16.msra.mxu0 0
    %524 = vmatprep.subr.bf16.mxu0 0
    %525 = vmatpush1.bf16.msra.mxu0 0
    %526 = vmatprep.subr.bf16.mxu0 0
    %527 = vmatpush1.bf16.msra.mxu0 0
    %528 = vmatprep.subr.bf16.mxu0 0
    %529 = vmatpush1.bf16.msra.mxu0 0
    %530 = vmatprep.subr.bf16.mxu0 0
    %531 = vmatpush1.bf16.msra.mxu0 0
    %532 = vmatprep.subr.bf16.mxu0 0
    %533 = vmatpush1.bf16.msra.mxu0 0
    %534 = vmatprep.subr.bf16.mxu0 0
    %535 = vmatpush1.bf16.msra.mxu0 0
    %536 = vmatprep.subr.bf16.mxu0 0
    %537 = vmatpush1.bf16.msra.mxu0 0
    %538 = vmatprep.subr.bf16.mxu0 0
    %539 = vmatpush1.bf16.msra.mxu0 0
    %540 = vmatprep.mubr.bf16.mxu0 0
    %541 = vmatmul.mubr.bf16.gmra.mrb[0].mxu0 %v503
    %v542 = vpop.f32.mrb[0].mxu0
    %v543 = vadd.f32 0.0, %v542
    %v544 = vpop.f32.mrb[0].mxu0
    %v545 = vpop.f32.mrb[0].mxu0
    %v546 = vpop.f32.mrb[0].mxu0
    %547 = vdwg.mxu0
    %v548 = vrcp.pop %v449
    %v549 = vrcp.pop %v452
    %v550 = vmul.f32 %v497, %v548
    %v551 = vmul.f32 %v543, %v549
    %v552 = vpack.c.bf16 %v551, %v550
    %554 = vrot.lane.b32.xlu0 %v336, 120
    %v555 = vpop.permute.xlu0 %554
    %557 = vrot.lane.b32.xlu0 %v338, 120
    %v558 = vpop.permute.xlu0 %557
    %v560 = vsel %vm342, %v555, 0
    %v563 = vsel %vm342, %v558, 0
    %565 = vmatprep.subr.bf16.mxu0 0
    %566 = vmatpush1.bf16.xpose.msra.mxu0 %v563
    %567 = vmatprep.subr.bf16.mxu0 0
    %568 = vmatpush1.bf16.xpose.msra.mxu0 0
    %569 = vmatprep.subr.bf16.mxu0 0
    %570 = vmatpush1.bf16.xpose.msra.mxu0 0
    %571 = vmatprep.subr.bf16.mxu0 0
    %572 = vmatpush1.bf16.xpose.msra.mxu0 0
    %573 = vmatprep.subr.bf16.mxu0 0
    %574 = vmatpush1.bf16.xpose.msra.mxu0 0
    %575 = vmatprep.subr.bf16.mxu0 0
    %576 = vmatpush1.bf16.xpose.msra.mxu0 0
    %577 = vmatprep.subr.bf16.mxu0 0
    %578 = vmatpush1.bf16.xpose.msra.mxu0 0
    %579 = vmatprep.subr.bf16.mxu0 0
    %580 = vmatpush1.bf16.xpose.msra.mxu0 0
    %581 = vmatprep.subr.bf16.mxu0 0
    %582 = vmatpush1.bf16.xpose.msra.mxu0 0
    %583 = vmatprep.subr.bf16.mxu0 0
    %584 = vmatpush1.bf16.xpose.msra.mxu0 0
    %585 = vmatprep.subr.bf16.mxu0 0
    %586 = vmatpush1.bf16.xpose.msra.mxu0 0
    %587 = vmatprep.subr.bf16.mxu0 0
    %588 = vmatpush1.bf16.xpose.msra.mxu0 0
    %589 = vmatprep.subr.bf16.mxu0 0
    %590 = vmatpush1.bf16.xpose.msra.mxu0 0
    %591 = vmatprep.subr.bf16.mxu0 0
    %592 = vmatpush1.bf16.xpose.msra.mxu0 0
    %593 = vmatprep.subr.bf16.mxu0 0
    %594 = vmatpush1.bf16.xpose.msra.mxu0 0
    %595 = vmatprep.subr.bf16.mxu0 0
    %596 = vmatpush1.bf16.xpose.msra.mxu0 0
    %597 = vmatprep.mubr.bf16.mxu0 0
    %598 = vmatmul.mubr.bf16.gmra.mrb[0].mxu0 %v560
    %v599 = vpop.f32.mrb[0].mxu0
    %v600 = vadd.f32 %v330, %v599
    %v601 = vpop.f32.mrb[0].mxu0
    %v602 = vpop.f32.mrb[0].mxu0
    %v603 = vpop.f32.mrb[0].mxu0
    %604 = vdwg.mxu0
    %606 = vrot.lane.b32.xlu0 %v337, 120
    %v607 = vpop.permute.xlu0 %606
    %609 = vrot.lane.b32.xlu0 %v339, 120
    %v610 = vpop.permute.xlu0 %609
    %v612 = vsel %vm342, %v607, 0
    %v615 = vsel %vm342, %v610, 0
    %617 = vmatprep.subr.bf16.mxu0 0
    %618 = vmatpush1.bf16.xpose.msra.mxu0 %v615
    %619 = vmatprep.subr.bf16.mxu0 0
    %620 = vmatpush1.bf16.xpose.msra.mxu0 0
    %621 = vmatprep.subr.bf16.mxu0 0
    %622 = vmatpush1.bf16.xpose.msra.mxu0 0
    %623 = vmatprep.subr.bf16.mxu0 0
    %624 = vmatpush1.bf16.xpose.msra.mxu0 0
    %625 = vmatprep.subr.bf16.mxu0 0
    %626 = vmatpush1.bf16.xpose.msra.mxu0 0
    %627 = vmatprep.subr.bf16.mxu0 0
    %628 = vmatpush1.bf16.xpose.msra.mxu0 0
    %629 = vmatprep.subr.bf16.mxu0 0
    %630 = vmatpush1.bf16.xpose.msra.mxu0 0
    %631 = vmatprep.subr.bf16.mxu0 0
    %632 = vmatpush1.bf16.xpose.msra.mxu0 0
    %633 = vmatprep.subr.bf16.mxu0 0
    %634 = vmatpush1.bf16.xpose.msra.mxu0 0
    %635 = vmatprep.subr.bf16.mxu0 0
    %636 = vmatpush1.bf16.xpose.msra.mxu0 0
    %637 = vmatprep.subr.bf16.mxu0 0
    %638 = vmatpush1.bf16.xpose.msra.mxu0 0
    %639 = vmatprep.subr.bf16.mxu0 0
    %640 = vmatpush1.bf16.xpose.msra.mxu0 0
    %641 = vmatprep.subr.bf16.mxu0 0
    %642 = vmatpush1.bf16.xpose.msra.mxu0 0
    %643 = vmatprep.subr.bf16.mxu0 0
    %644 = vmatpush1.bf16.xpose.msra.mxu0 0
    %645 = vmatprep.subr.bf16.mxu0 0
    %646 = vmatpush1.bf16.xpose.msra.mxu0 0
    %647 = vmatprep.subr.bf16.mxu0 0
    %648 = vmatpush1.bf16.xpose.msra.mxu0 0
    %649 = vmatprep.mubr.bf16.mxu0 0
    %650 = vmatmul.mubr.bf16.gmra.mrb[0].mxu0 %v612
    %v651 = vpop.f32.mrb[0].mxu0
    %v652 = vadd.f32 %v331, %v651
    %v653 = vpop.f32.mrb[0].mxu0
    %v654 = vpop.f32.mrb[0].mxu0
    %v655 = vpop.f32.mrb[0].mxu0
    %656 = vdwg.mxu0
    %v657 = vsel %vm342, %v600, -inf
    %658 = vmax.xlane.f32.xlu0 %v657
    %v659 = vpop.xlane.xlu0 %658
    %v660 = vsel %vm342, %v652, -inf
    %661 = vmax.xlane.f32.xlu0 %v660
    %v662 = vpop.xlane.xlu0 %661
    %v663 = vsub.f32 %v600, %v659
    %v664 = vsub.f32 %v652, %v662
    %v665 = vmul.f32 %v663, 1.442695
    %v666 = vpow.pop %v665
    %v667 = vmul.f32 %v664, 1.442695
    %v668 = vpow.pop %v667
    %v669 = vsel %vm342, %v666, 0.0
    %670 = vadd.xlane.f32.xlu0 %v669
    %v671 = vpop.xlane.xlu0 %670
    %v672 = vsel %vm342, %v668, 0.0
    %673 = vadd.xlane.f32.xlu0 %v672
    %v674 = vpop.xlane.xlu0 %673
    %v675 = vpack.c.bf16 %v666, %v666
    %v676 = vpack.c.bf16 %v668, %v668
    %678 = vrot.lane.b32.xlu0 %v340, 120
    %v679 = vpop.permute.xlu0 %678
    %v681 = vsel %vm342, %v675, 0
    %v684 = vsel %vm458, %v679, 0
    %686 = vmatprep.subr.bf16.mxu0 0
    %687 = vmatpush1.bf16.msra.mxu0 %v684
    %688 = vmatprep.subr.bf16.mxu0 0
    %689 = vmatpush1.bf16.msra.mxu0 0
    %690 = vmatprep.subr.bf16.mxu0 0
    %691 = vmatpush1.bf16.msra.mxu0 0
    %692 = vmatprep.subr.bf16.mxu0 0
    %693 = vmatpush1.bf16.msra.mxu0 0
    %694 = vmatprep.subr.bf16.mxu0 0
    %695 = vmatpush1.bf16.msra.mxu0 0
    %696 = vmatprep.subr.bf16.mxu0 0
    %697 = vmatpush1.bf16.msra.mxu0 0
    %698 = vmatprep.subr.bf16.mxu0 0
    %699 = vmatpush1.bf16.msra.mxu0 0
    %700 = vmatprep.subr.bf16.mxu0 0
    %701 = vmatpush1.bf16.msra.mxu0 0
    %702 = vmatprep.subr.bf16.mxu0 0
    %703 = vmatpush1.bf16.msra.mxu0 0
    %704 = vmatprep.subr.bf16.mxu0 0
    %705 = vmatpush1.bf16.msra.mxu0 0
    %706 = vmatprep.subr.bf16.mxu0 0
    %707 = vmatpush1.bf16.msra.mxu0 0
    %708 = vmatprep.subr.bf16.mxu0 0
    %709 = vmatpush1.bf16.msra.mxu0 0
    %710 = vmatprep.subr.bf16.mxu0 0
    %711 = vmatpush1.bf16.msra.mxu0 0
    %712 = vmatprep.subr.bf16.mxu0 0
    %713 = vmatpush1.bf16.msra.mxu0 0
    %714 = vmatprep.subr.bf16.mxu0 0
    %715 = vmatpush1.bf16.msra.mxu0 0
    %716 = vmatprep.subr.bf16.mxu0 0
    %717 = vmatpush1.bf16.msra.mxu0 0
    %718 = vmatprep.mubr.bf16.mxu0 0
    %719 = vmatmul.mubr.bf16.gmra.mrb[0].mxu0 %v681
    %v720 = vpop.f32.mrb[0].mxu0
    %v721 = vadd.f32 0.0, %v720
    %v722 = vpop.f32.mrb[0].mxu0
    %v723 = vpop.f32.mrb[0].mxu0
    %v724 = vpop.f32.mrb[0].mxu0
    %725 = vdwg.mxu0
    %727 = vrot.lane.b32.xlu0 %v341, 120
    %v728 = vpop.permute.xlu0 %727
    %v730 = vsel %vm342, %v676, 0
    %v733 = vsel %vm458, %v728, 0
    %735 = vmatprep.subr.bf16.mxu0 0
    %736 = vmatpush1.bf16.msra.mxu0 %v733
    %737 = vmatprep.subr.bf16.mxu0 0
    %738 = vmatpush1.bf16.msra.mxu0 0
    %739 = vmatprep.subr.bf16.mxu0 0
    %740 = vmatpush1.bf16.msra.mxu0 0
    %741 = vmatprep.subr.bf16.mxu0 0
    %742 = vmatpush1.bf16.msra.mxu0 0
    %743 = vmatprep.subr.bf16.mxu0 0
    %744 = vmatpush1.bf16.msra.mxu0 0
    %745 = vmatprep.subr.bf16.mxu0 0
    %746 = vmatpush1.bf16.msra.mxu0 0
    %747 = vmatprep.subr.bf16.mxu0 0
    %748 = vmatpush1.bf16.msra.mxu0 0
    %749 = vmatprep.subr.bf16.mxu0 0
    %750 = vmatpush1.bf16.msra.mxu0 0
    %751 = vmatprep.subr.bf16.mxu0 0
    %752 = vmatpush1.bf16.msra.mxu0 0
    %753 = vmatprep.subr.bf16.mxu0 0
    %754 = vmatpush1.bf16.msra.mxu0 0
    %755 = vmatprep.subr.bf16.mxu0 0
    %756 = vmatpush1.bf16.msra.mxu0 0
    %757 = vmatprep.subr.bf16.mxu0 0
    %758 = vmatpush1.bf16.msra.mxu0 0
    %759 = vmatprep.subr.bf16.mxu0 0
    %760 = vmatpush1.bf16.msra.mxu0 0
    %761 = vmatprep.subr.bf16.mxu0 0
    %762 = vmatpush1.bf16.msra.mxu0 0
    %763 = vmatprep.subr.bf16.mxu0 0
    %764 = vmatpush1.bf16.msra.mxu0 0
    %765 = vmatprep.subr.bf16.mxu0 0
    %766 = vmatpush1.bf16.msra.mxu0 0
    %767 = vmatprep.mubr.bf16.mxu0 0
    %768 = vmatmul.mubr.bf16.gmra.mrb[0].mxu0 %v730
    %v769 = vpop.f32.mrb[0].mxu0
    %v770 = vadd.f32 0.0, %v769
    %v771 = vpop.f32.mrb[0].mxu0
    %v772 = vpop.f32.mrb[0].mxu0
    %v773 = vpop.f32.mrb[0].mxu0
    %774 = vdwg.mxu0
    %v775 = vrcp.pop %v671
    %v776 = vrcp.pop %v674
    %v777 = vmul.f32 %v721, %v775
    %v778 = vmul.f32 %v770, %v776
    %v779 = vpack.c.bf16 %v778, %v777
    %v781 = vsel %vm342, %v779, 0
    %v784 = vsel %vm458, %v333, 0
    %786 = vmatprep.subr.bf16.mxu0 0
    %787 = vmatpush1.bf16.msra.mxu0 %v784
    %788 = vmatprep.subr.bf16.mxu0 0
    %789 = vmatpush1.bf16.msra.mxu0 0
    %790 = vmatprep.subr.bf16.mxu0 0
    %791 = vmatpush1.bf16.msra.mxu0 0
    %792 = vmatprep.subr.bf16.mxu0 0
    %793 = vmatpush1.bf16.msra.mxu0 0
    %794 = vmatprep.subr.bf16.mxu0 0
    %795 = vmatpush1.bf16.msra.mxu0 0
    %796 = vmatprep.subr.bf16.mxu0 0
    %797 = vmatpush1.bf16.msra.mxu0 0
    %798 = vmatprep.subr.bf16.mxu0 0
    %799 = vmatpush1.bf16.msra.mxu0 0
    %800 = vmatprep.subr.bf16.mxu0 0
    %801 = vmatpush1.bf16.msra.mxu0 0
    %802 = vmatprep.subr.bf16.mxu0 0
    %803 = vmatpush1.bf16.msra.mxu0 0
    %804 = vmatprep.subr.bf16.mxu0 0
    %805 = vmatpush1.bf16.msra.mxu0 0
    %806 = vmatprep.subr.bf16.mxu0 0
    %807 = vmatpush1.bf16.msra.mxu0 0
    %808 = vmatprep.subr.bf16.mxu0 0
    %809 = vmatpush1.bf16.msra.mxu0 0
    %810 = vmatprep.subr.bf16.mxu0 0
    %811 = vmatpush1.bf16.msra.mxu0 0
    %812 = vmatprep.subr.bf16.mxu0 0
    %813 = vmatpush1.bf16.msra.mxu0 0
    %814 = vmatprep.subr.bf16.mxu0 0
    %815 = vmatpush1.bf16.msra.mxu0 0
    %816 = vmatprep.subr.bf16.mxu0 0
    %817 = vmatpush1.bf16.msra.mxu0 0
    %818 = vmatprep.mubr.bf16.mxu0 0
    %819 = vmatmul.mubr.bf16.gmra.mrb[0].mxu0 %v781
    %v820 = vpop.f32.mrb[0].mxu0
    %v821 = vadd.f32 0.0, %v820
    %v822 = vpop.f32.mrb[0].mxu0
    %v823 = vpop.f32.mrb[0].mxu0
    %v824 = vadd.f32 0.0, %v823
    %v825 = vpop.f32.mrb[0].mxu0
    %826 = vdwg.mxu0
    %v828 = vsel %vm342, %v552, 0
    %v831 = vsel %vm458, %v332, 0
    %833 = vmatprep.subr.bf16.mxu0 0
    %834 = vmatpush1.bf16.msra.mxu0 %v831
    %835 = vmatprep.subr.bf16.mxu0 0
    %836 = vmatpush1.bf16.msra.mxu0 0
    %837 = vmatprep.subr.bf16.mxu0 0
    %838 = vmatpush1.bf16.msra.mxu0 0
    %839 = vmatprep.subr.bf16.mxu0 0
    %840 = vmatpush1.bf16.msra.mxu0 0
    %841 = vmatprep.subr.bf16.mxu0 0
    %842 = vmatpush1.bf16.msra.mxu0 0
    %843 = vmatprep.subr.bf16.mxu0 0
    %844 = vmatpush1.bf16.msra.mxu0 0
    %845 = vmatprep.subr.bf16.mxu0 0
    %846 = vmatpush1.bf16.msra.mxu0 0
    %847 = vmatprep.subr.bf16.mxu0 0
    %848 = vmatpush1.bf16.msra.mxu0 0
    %849 = vmatprep.subr.bf16.mxu0 0
    %850 = vmatpush1.bf16.msra.mxu0 0
    %851 = vmatprep.subr.bf16.mxu0 0
    %852 = vmatpush1.bf16.msra.mxu0 0
    %853 = vmatprep.subr.bf16.mxu0 0
    %854 = vmatpush1.bf16.msra.mxu0 0
    %855 = vmatprep.subr.bf16.mxu0 0
    %856 = vmatpush1.bf16.msra.mxu0 0
    %857 = vmatprep.subr.bf16.mxu0 0
    %858 = vmatpush1.bf16.msra.mxu0 0
    %859 = vmatprep.subr.bf16.mxu0 0
    %860 = vmatpush1.bf16.msra.mxu0 0
    %861 = vmatprep.subr.bf16.mxu0 0
    %862 = vmatpush1.bf16.msra.mxu0 0
    %863 = vmatprep.subr.bf16.mxu0 0
    %864 = vmatpush1.bf16.msra.mxu0 0
    %865 = vmatprep.mubr.bf16.mxu0 0
    %866 = vmatmul.mubr.bf16.gmra.mrb[0].mxu0 %v828
    %v867 = vpop.f32.mrb[0].mxu0
    %v868 = vadd.f32 %v821, %v867
    %v869 = vpop.f32.mrb[0].mxu0
    %v870 = vpop.f32.mrb[0].mxu0
    %v871 = vadd.f32 %v824, %v870
    %v872 = vpop.f32.mrb[0].mxu0
    %873 = vdwg.mxu0
    %874 = vrot.lane.b32.xlu0 %v336, 112
    %v875 = vpop.permute.xlu0 %874
    %876 = vrot.lane.b32.xlu0 %v338, 112
    %v877 = vpop.permute.xlu0 %876
    %v879 = vsel %vm342, %v875, 0
    %v882 = vsel %vm342, %v877, 0
    %884 = vmatprep.subr.bf16.mxu0 0
    %885 = vmatpush1.bf16.xpose.msra.mxu0 %v882
    %886 = vmatprep.subr.bf16.mxu0 0
    %887 = vmatpush1.bf16.xpose.msra.mxu0 0
    %888 = vmatprep.subr.bf16.mxu0 0
    %889 = vmatpush1.bf16.xpose.msra.mxu0 0
    %890 = vmatprep.subr.bf16.mxu0 0
    %891 = vmatpush1.bf16.xpose.msra.mxu0 0
    %892 = vmatprep.subr.bf16.mxu0 0
    %893 = vmatpush1.bf16.xpose.msra.mxu0 0
    %894 = vmatprep.subr.bf16.mxu0 0
    %895 = vmatpush1.bf16.xpose.msra.mxu0 0
    %896 = vmatprep.subr.bf16.mxu0 0
    %897 = vmatpush1.bf16.xpose.msra.mxu0 0
    %898 = vmatprep.subr.bf16.mxu0 0
    %899 = vmatpush1.bf16.xpose.msra.mxu0 0
    %900 = vmatprep.subr.bf16.mxu0 0
    %901 = vmatpush1.bf16.xpose.msra.mxu0 0
    %902 = vmatprep.subr.bf16.mxu0 0
    %903 = vmatpush1.bf16.xpose.msra.mxu0 0
    %904 = vmatprep.subr.bf16.mxu0 0
    %905 = vmatpush1.bf16.xpose.msra.mxu0 0
    %906 = vmatprep.subr.bf16.mxu0 0
    %907 = vmatpush1.bf16.xpose.msra.mxu0 0
    %908 = vmatprep.subr.bf16.mxu0 0
    %909 = vmatpush1.bf16.xpose.msra.mxu0 0
    %910 = vmatprep.subr.bf16.mxu0 0
    %911 = vmatpush1.bf16.xpose.msra.mxu0 0
    %912 = vmatprep.subr.bf16.mxu0 0
    %913 = vmatpush1.bf16.xpose.msra.mxu0 0
    %914 = vmatprep.subr.bf16.mxu0 0
    %915 = vmatpush1.bf16.xpose.msra.mxu0 0
    %916 = vmatprep.mubr.bf16.mxu0 0
    %917 = vmatmul.mubr.bf16.gmra.mrb[0].mxu0 %v879
    %v918 = vpop.f32.mrb[0].mxu0
    %v919 = vadd.f32 %v330, %v918
    %v920 = vpop.f32.mrb[0].mxu0
    %v921 = vpop.f32.mrb[0].mxu0
    %v922 = vpop.f32.mrb[0].mxu0
    %923 = vdwg.mxu0
    %924 = vrot.lane.b32.xlu0 %v337, 112
    %v925 = vpop.permute.xlu0 %924
    %926 = vrot.lane.b32.xlu0 %v339, 112
    %v927 = vpop.permute.xlu0 %926
    %v929 = vsel %vm342, %v925, 0
    %v932 = vsel %vm342, %v927, 0
    %934 = vmatprep.subr.bf16.mxu0 0
    %935 = vmatpush1.bf16.xpose.msra.mxu0 %v932
    %936 = vmatprep.subr.bf16.mxu0 0
    %937 = vmatpush1.bf16.xpose.msra.mxu0 0
    %938 = vmatprep.subr.bf16.mxu0 0
    %939 = vmatpush1.bf16.xpose.msra.mxu0 0
    %940 = vmatprep.subr.bf16.mxu0 0
    %941 = vmatpush1.bf16.xpose.msra.mxu0 0
    %942 = vmatprep.subr.bf16.mxu0 0
    %943 = vmatpush1.bf16.xpose.msra.mxu0 0
    %944 = vmatprep.subr.bf16.mxu0 0
    %945 = vmatpush1.bf16.xpose.msra.mxu0 0
    %946 = vmatprep.subr.bf16.mxu0 0
    %947 = vmatpush1.bf16.xpose.msra.mxu0 0
    %948 = vmatprep.subr.bf16.mxu0 0
    %949 = vmatpush1.bf16.xpose.msra.mxu0 0
    %950 = vmatprep.subr.bf16.mxu0 0
    %951 = vmatpush1.bf16.xpose.msra.mxu0 0
    %952 = vmatprep.subr.bf16.mxu0 0
    %953 = vmatpush1.bf16.xpose.msra.mxu0 0
    %954 = vmatprep.subr.bf16.mxu0 0
    %955 = vmatpush1.bf16.xpose.msra.mxu0 0
    %956 = vmatprep.subr.bf16.mxu0 0
    %957 = vmatpush1.bf16.xpose.msra.mxu0 0
    %958 = vmatprep.subr.bf16.mxu0 0
    %959 = vmatpush1.bf16.xpose.msra.mxu0 0
    %960 = vmatprep.subr.bf16.mxu0 0
    %961 = vmatpush1.bf16.xpose.msra.mxu0 0
    %962 = vmatprep.subr.bf16.mxu0 0
    %963 = vmatpush1.bf16.xpose.msra.mxu0 0
    %964 = vmatprep.subr.bf16.mxu0 0
    %965 = vmatpush1.bf16.xpose.msra.mxu0 0
    %966 = vmatprep.mubr.bf16.mxu0 0
    %967 = vmatmul.mubr.bf16.gmra.mrb[0].mxu0 %v929
    %v968 = vpop.f32.mrb[0].mxu0
    %v969 = vadd.f32 %v331, %v968
    %v970 = vpop.f32.mrb[0].mxu0
    %v971 = vpop.f32.mrb[0].mxu0
    %v972 = vpop.f32.mrb[0].mxu0
    %973 = vdwg.mxu0
    %v974 = vsel %vm342, %v919, -inf
    %975 = vmax.xlane.f32.xlu0 %v974
    %v976 = vpop.xlane.xlu0 %975
    %v977 = vsel %vm342, %v969, -inf
    %978 = vmax.xlane.f32.xlu0 %v977
    %v979 = vpop.xlane.xlu0 %978
    %v980 = vsub.f32 %v919, %v976
    %v981 = vsub.f32 %v969, %v979
    %v982 = vmul.f32 %v980, 1.442695
    %v983 = vpow.pop %v982
    %v984 = vmul.f32 %v981, 1.442695
    %v985 = vpow.pop %v984
    %v986 = vsel %vm342, %v983, 0.0
    %987 = vadd.xlane.f32.xlu0 %v986
    %v988 = vpop.xlane.xlu0 %987
    %v989 = vsel %vm342, %v985, 0.0
    %990 = vadd.xlane.f32.xlu0 %v989
    %v991 = vpop.xlane.xlu0 %990
    %v992 = vpack.c.bf16 %v983, %v983
    %v993 = vpack.c.bf16 %v985, %v985
    %994 = vrot.lane.b32.xlu0 %v340, 112
    %v995 = vpop.permute.xlu0 %994
    %v997 = vsel %vm342, %v992, 0
    %v1000 = vsel %vm458, %v995, 0
    %1002 = vmatprep.subr.bf16.mxu0 0
    %1003 = vmatpush1.bf16.msra.mxu0 %v1000
    %1004 = vmatprep.subr.bf16.mxu0 0
    %1005 = vmatpush1.bf16.msra.mxu0 0
    %1006 = vmatprep.subr.bf16.mxu0 0
    %1007 = vmatpush1.bf16.msra.mxu0 0
    %1008 = vmatprep.subr.bf16.mxu0 0
    %1009 = vmatpush1.bf16.msra.mxu0 0
    %1010 = vmatprep.subr.bf16.mxu0 0
    %1011 = vmatpush1.bf16.msra.mxu0 0
    %1012 = vmatprep.subr.bf16.mxu0 0
    %1013 = vmatpush1.bf16.msra.mxu0 0
    %1014 = vmatprep.subr.bf16.mxu0 0
    %1015 = vmatpush1.bf16.msra.mxu0 0
    %1016 = vmatprep.subr.bf16.mxu0 0
    %1017 = vmatpush1.bf16.msra.mxu0 0
    %1018 = vmatprep.subr.bf16.mxu0 0
    %1019 = vmatpush1.bf16.msra.mxu0 0
    %1020 = vmatprep.subr.bf16.mxu0 0
    %1021 = vmatpush1.bf16.msra.mxu0 0
    %1022 = vmatprep.subr.bf16.mxu0 0
    %1023 = vmatpush1.bf16.msra.mxu0 0
    %1024 = vmatprep.subr.bf16.mxu0 0
    %1025 = vmatpush1.bf16.msra.mxu0 0
    %1026 = vmatprep.subr.bf16.mxu0 0
    %1027 = vmatpush1.bf16.msra.mxu0 0
    %1028 = vmatprep.subr.bf16.mxu0 0
    %1029 = vmatpush1.bf16.msra.mxu0 0
    %1030 = vmatprep.subr.bf16.mxu0 0
    %1031 = vmatpush1.bf16.msra.mxu0 0
    %1032 = vmatprep.subr.bf16.mxu0 0
    %1033 = vmatpush1.bf16.msra.mxu0 0
    %1034 = vmatprep.mubr.bf16.mxu0 0
    %1035 = vmatmul.mubr.bf16.gmra.mrb[0].mxu0 %v997
    %v1036 = vpop.f32.mrb[0].mxu0
    %v1037 = vadd.f32 0.0, %v1036
    %v1038 = vpop.f32.mrb[0].mxu0
    %v1039 = vpop.f32.mrb[0].mxu0
    %v1040 = vpop.f32.mrb[0].mxu0
    %1041 = vdwg.mxu0
    %1042 = vrot.lane.b32.xlu0 %v341, 112
    %v1043 = vpop.permute.xlu0 %1042
    %v1045 = vsel %vm342, %v993, 0
    %v1048 = vsel %vm458, %v1043, 0
    %1050 = vmatprep.subr.bf16.mxu0 0
    %1051 = vmatpush1.bf16.msra.mxu0 %v1048
    %1052 = vmatprep.subr.bf16.mxu0 0
    %1053 = vmatpush1.bf16.msra.mxu0 0
    %1054 = vmatprep.subr.bf16.mxu0 0
    %1055 = vmatpush1.bf16.msra.mxu0 0
    %1056 = vmatprep.subr.bf16.mxu0 0
    %1057 = vmatpush1.bf16.msra.mxu0 0
    %1058 = vmatprep.subr.bf16.mxu0 0
    %1059 = vmatpush1.bf16.msra.mxu0 0
    %1060 = vmatprep.subr.bf16.mxu0 0
    %1061 = vmatpush1.bf16.msra.mxu0 0
    %1062 = vmatprep.subr.bf16.mxu0 0
    %1063 = vmatpush1.bf16.msra.mxu0 0
    %1064 = vmatprep.subr.bf16.mxu0 0
    %1065 = vmatpush1.bf16.msra.mxu0 0
    %1066 = vmatprep.subr.bf16.mxu0 0
    %1067 = vmatpush1.bf16.msra.mxu0 0
    %1068 = vmatprep.subr.bf16.mxu0 0
    %1069 = vmatpush1.bf16.msra.mxu0 0
    %1070 = vmatprep.subr.bf16.mxu0 0
    %1071 = vmatpush1.bf16.msra.mxu0 0
    %1072 = vmatprep.subr.bf16.mxu0 0
    %1073 = vmatpush1.bf16.msra.mxu0 0
    %1074 = vmatprep.subr.bf16.mxu0 0
    %1075 = vmatpush1.bf16.msra.mxu0 0
    %1076 = vmatprep.subr.bf16.mxu0 0
    %1077 = vmatpush1.bf16.msra.mxu0 0
    %1078 = vmatprep.subr.bf16.mxu0 0
    %1079 = vmatpush1.bf16.msra.mxu0 0
    %1080 = vmatprep.subr.bf16.mxu0 0
    %1081 = vmatpush1.bf16.msra.mxu0 0
    %1082 = vmatprep.mubr.bf16.mxu0 0
    %1083 = vmatmul.mubr.bf16.gmra.mrb[0].mxu0 %v1045
    %v1084 = vpop.f32.mrb[0].mxu0
    %v1085 = vadd.f32 0.0, %v1084
    %v1086 = vpop.f32.mrb[0].mxu0
    %v1087 = vpop.f32.mrb[0].mxu0
    %v1088 = vpop.f32.mrb[0].mxu0
    %1089 = vdwg.mxu0
    %v1090 = vrcp.pop %v988
    %v1091 = vrcp.pop %v991
    %v1092 = vmul.f32 %v1037, %v1090
    %v1093 = vmul.f32 %v1085, %v1091
    %v1094 = vpack.c.bf16 %v1093, %v1092
    %v1096 = vsel %vm342, %v1094, 0
    %v1099 = vsel %vm458, %v334, 0
    %1101 = vmatprep.subr.bf16.mxu0 0
    %1102 = vmatpush1.bf16.msra.mxu0 %v1099
    %1103 = vmatprep.subr.bf16.mxu0 0
    %1104 = vmatpush1.bf16.msra.mxu0 0
    %1105 = vmatprep.subr.bf16.mxu0 0
    %1106 = vmatpush1.bf16.msra.mxu0 0
    %1107 = vmatprep.subr.bf16.mxu0 0
    %1108 = vmatpush1.bf16.msra.mxu0 0
    %1109 = vmatprep.subr.bf16.mxu0 0
    %1110 = vmatpush1.bf16.msra.mxu0 0
    %1111 = vmatprep.subr.bf16.mxu0 0
    %1112 = vmatpush1.bf16.msra.mxu0 0
    %1113 = vmatprep.subr.bf16.mxu0 0
    %1114 = vmatpush1.bf16.msra.mxu0 0
    %1115 = vmatprep.subr.bf16.mxu0 0
    %1116 = vmatpush1.bf16.msra.mxu0 0
    %1117 = vmatprep.subr.bf16.mxu0 0
    %1118 = vmatpush1.bf16.msra.mxu0 0
    %1119 = vmatprep.subr.bf16.mxu0 0
    %1120 = vmatpush1.bf16.msra.mxu0 0
    %1121 = vmatprep.subr.bf16.mxu0 0
    %1122 = vmatpush1.bf16.msra.mxu0 0
    %1123 = vmatprep.subr.bf16.mxu0 0
    %1124 = vmatpush1.bf16.msra.mxu0 0
    %1125 = vmatprep.subr.bf16.mxu0 0
    %1126 = vmatpush1.bf16.msra.mxu0 0
    %1127 = vmatprep.subr.bf16.mxu0 0
    %1128 = vmatpush1.bf16.msra.mxu0 0
    %1129 = vmatprep.subr.bf16.mxu0 0
    %1130 = vmatpush1.bf16.msra.mxu0 0
    %1131 = vmatprep.subr.bf16.mxu0 0
    %1132 = vmatpush1.bf16.msra.mxu0 0
    %1133 = vmatprep.mubr.bf16.mxu0 0
    %1134 = vmatmul.mubr.bf16.gmra.mrb[0].mxu0 %v1096
    %v1135 = vpop.f32.mrb[0].mxu0
    %v1136 = vadd.f32 0.0, %v1135
    %v1137 = vpop.f32.mrb[0].mxu0
    %v1138 = vpop.f32.mrb[0].mxu0
    %v1139 = vadd.f32 0.0, %v1138
    %v1140 = vpop.f32.mrb[0].mxu0
    %1141 = vdwg.mxu0
    %v1142 = vadd.f32 %v868, %v1136
    %v1143 = vadd.f32 %v871, %v1139
    %1144 = vrot.lane.b32.xlu0 %v336, 104
    %v1145 = vpop.permute.xlu0 %1144
    %1146 = vrot.lane.b32.xlu0 %v338, 104
    %v1147 = vpop.permute.xlu0 %1146
    %v1149 = vsel %vm342, %v1145, 0
    %v1152 = vsel %vm342, %v1147, 0
    %1154 = vmatprep.subr.bf16.mxu0 0
    %1155 = vmatpush1.bf16.xpose.msra.mxu0 %v1152
    %1156 = vmatprep.subr.bf16.mxu0 0
    %1157 = vmatpush1.bf16.xpose.msra.mxu0 0
    %1158 = vmatprep.subr.bf16.mxu0 0
    %1159 = vmatpush1.bf16.xpose.msra.mxu0 0
    %1160 = vmatprep.subr.bf16.mxu0 0
    %1161 = vmatpush1.bf16.xpose.msra.mxu0 0
    %1162 = vmatprep.subr.bf16.mxu0 0
    %1163 = vmatpush1.bf16.xpose.msra.mxu0 0
    %1164 = vmatprep.subr.bf16.mxu0 0
    %1165 = vmatpush1.bf16.xpose.msra.mxu0 0
    %1166 = vmatprep.subr.bf16.mxu0 0
    %1167 = vmatpush1.bf16.xpose.msra.mxu0 0
    %1168 = vmatprep.subr.bf16.mxu0 0
    %1169 = vmatpush1.bf16.xpose.msra.mxu0 0
    %1170 = vmatprep.subr.bf16.mxu0 0
    %1171 = vmatpush1.bf16.xpose.msra.mxu0 0
    %1172 = vmatprep.subr.bf16.mxu0 0
    %1173 = vmatpush1.bf16.xpose.msra.mxu0 0
    %1174 = vmatprep.subr.bf16.mxu0 0
    %1175 = vmatpush1.bf16.xpose.msra.mxu0 0
    %1176 = vmatprep.subr.bf16.mxu0 0
    %1177 = vmatpush1.bf16.xpose.msra.mxu0 0
    %1178 = vmatprep.subr.bf16.mxu0 0
    %1179 = vmatpush1.bf16.xpose.msra.mxu0 0
    %1180 = vmatprep.subr.bf16.mxu0 0
    %1181 = vmatpush1.bf16.xpose.msra.mxu0 0
    %1182 = vmatprep.subr.bf16.mxu0 0
    %1183 = vmatpush1.bf16.xpose.msra.mxu0 0
    %1184 = vmatprep.subr.bf16.mxu0 0
    %1185 = vmatpush1.bf16.xpose.msra.mxu0 0
    %1186 = vmatprep.mubr.bf16.mxu0 0
    %1187 = vmatmul.mubr.bf16.gmra.mrb[0].mxu0 %v1149
    %v1188 = vpop.f32.mrb[0].mxu0
    %v1189 = vadd.f32 %v330, %v1188
    %v1190 = vpop.f32.mrb[0].mxu0
    %v1191 = vpop.f32.mrb[0].mxu0
    %v1192 = vpop.f32.mrb[0].mxu0
    %1193 = vdwg.mxu0
    %1194 = vrot.lane.b32.xlu0 %v337, 104
    %v1195 = vpop.permute.xlu0 %1194
    %1196 = vrot.lane.b32.xlu0 %v339, 104
    %v1197 = vpop.permute.xlu0 %1196
    %v1199 = vsel %vm342, %v1195, 0
    %v1202 = vsel %vm342, %v1197, 0
    %1204 = vmatprep.subr.bf16.mxu0 0
    %1205 = vmatpush1.bf16.xpose.msra.mxu0 %v1202
    %1206 = vmatprep.subr.bf16.mxu0 0
    %1207 = vmatpush1.bf16.xpose.msra.mxu0 0
    %1208 = vmatprep.subr.bf16.mxu0 0
    %1209 = vmatpush1.bf16.xpose.msra.mxu0 0
    %1210 = vmatprep.subr.bf16.mxu0 0
    %1211 = vmatpush1.bf16.xpose.msra.mxu0 0
    %1212 = vmatprep.subr.bf16.mxu0 0
    %1213 = vmatpush1.bf16.xpose.msra.mxu0 0
    %1214 = vmatprep.subr.bf16.mxu0 0
    %1215 = vmatpush1.bf16.xpose.msra.mxu0 0
    %1216 = vmatprep.subr.bf16.mxu0 0
    %1217 = vmatpush1.bf16.xpose.msra.mxu0 0
    %1218 = vmatprep.subr.bf16.mxu0 0
    %1219 = vmatpush1.bf16.xpose.msra.mxu0 0
    %1220 = vmatprep.subr.bf16.mxu0 0
    %1221 = vmatpush1.bf16.xpose.msra.mxu0 0
    %1222 = vmatprep.subr.bf16.mxu0 0
    %1223 = vmatpush1.bf16.xpose.msra.mxu0 0
    %1224 = vmatprep.subr.bf16.mxu0 0
    %1225 = vmatpush1.bf16.xpose.msra.mxu0 0
    %1226 = vmatprep.subr.bf16.mxu0 0
    %1227 = vmatpush1.bf16.xpose.msra.mxu0 0
    %1228 = vmatprep.subr.bf16.mxu0 0
    %1229 = vmatpush1.bf16.xpose.msra.mxu0 0
    %1230 = vmatprep.subr.bf16.mxu0 0
    %1231 = vmatpush1.bf16.xpose.msra.mxu0 0
    %1232 = vmatprep.subr.bf16.mxu0 0
    %1233 = vmatpush1.bf16.xpose.msra.mxu0 0
    %1234 = vmatprep.subr.bf16.mxu0 0
    %1235 = vmatpush1.bf16.xpose.msra.mxu0 0
    %1236 = vmatprep.mubr.bf16.mxu0 0
    %1237 = vmatmul.mubr.bf16.gmra.mrb[0].mxu0 %v1199
    %v1238 = vpop.f32.mrb[0].mxu0
    %v1239 = vadd.f32 %v331, %v1238
    %v1240 = vpop.f32.mrb[0].mxu0
    %v1241 = vpop.f32.mrb[0].mxu0
    %v1242 = vpop.f32.mrb[0].mxu0
    %1243 = vdwg.mxu0
    %v1244 = vsel %vm342, %v1189, -inf
    %1245 = vmax.xlane.f32.xlu0 %v1244
    %v1246 = vpop.xlane.xlu0 %1245
    %v1247 = vsel %vm342, %v1239, -inf
    %1248 = vmax.xlane.f32.xlu0 %v1247
    %v1249 = vpop.xlane.xlu0 %1248
    %v1250 = vsub.f32 %v1189, %v1246
    %v1251 = vsub.f32 %v1239, %v1249
    %v1252 = vmul.f32 %v1250, 1.442695
    %v1253 = vpow.pop %v1252
    %v1254 = vmul.f32 %v1251, 1.442695
    %v1255 = vpow.pop %v1254
    %v1256 = vsel %vm342, %v1253, 0.0
    %1257 = vadd.xlane.f32.xlu0 %v1256
    %v1258 = vpop.xlane.xlu0 %1257
    %v1259 = vsel %vm342, %v1255, 0.0
    %1260 = vadd.xlane.f32.xlu0 %v1259
    %v1261 = vpop.xlane.xlu0 %1260
    %v1262 = vpack.c.bf16 %v1253, %v1253
    %v1263 = vpack.c.bf16 %v1255, %v1255
    %1264 = vrot.lane.b32.xlu0 %v340, 104
    %v1265 = vpop.permute.xlu0 %1264
    %v1267 = vsel %vm342, %v1262, 0
    %v1270 = vsel %vm458, %v1265, 0
    %1272 = vmatprep.subr.bf16.mxu0 0
    %1273 = vmatpush1.bf16.msra.mxu0 %v1270
    %1274 = vmatprep.subr.bf16.mxu0 0
    %1275 = vmatpush1.bf16.msra.mxu0 0
    %1276 = vmatprep.subr.bf16.mxu0 0
    %1277 = vmatpush1.bf16.msra.mxu0 0
    %1278 = vmatprep.subr.bf16.mxu0 0
    %1279 = vmatpush1.bf16.msra.mxu0 0
    %1280 = vmatprep.subr.bf16.mxu0 0
    %1281 = vmatpush1.bf16.msra.mxu0 0
    %1282 = vmatprep.subr.bf16.mxu0 0
    %1283 = vmatpush1.bf16.msra.mxu0 0
    %1284 = vmatprep.subr.bf16.mxu0 0
    %1285 = vmatpush1.bf16.msra.mxu0 0
    %1286 = vmatprep.subr.bf16.mxu0 0
    %1287 = vmatpush1.bf16.msra.mxu0 0
    %1288 = vmatprep.subr.bf16.mxu0 0
    %1289 = vmatpush1.bf16.msra.mxu0 0
    %1290 = vmatprep.subr.bf16.mxu0 0
    %1291 = vmatpush1.bf16.msra.mxu0 0
    %1292 = vmatprep.subr.bf16.mxu0 0
    %1293 = vmatpush1.bf16.msra.mxu0 0
    %1294 = vmatprep.subr.bf16.mxu0 0
    %1295 = vmatpush1.bf16.msra.mxu0 0
    %1296 = vmatprep.subr.bf16.mxu0 0
    %1297 = vmatpush1.bf16.msra.mxu0 0
    %1298 = vmatprep.subr.bf16.mxu0 0
    %1299 = vmatpush1.bf16.msra.mxu0 0
    %1300 = vmatprep.subr.bf16.mxu0 0
    %1301 = vmatpush1.bf16.msra.mxu0 0
    %1302 = vmatprep.subr.bf16.mxu0 0
    %1303 = vmatpush1.bf16.msra.mxu0 0
    %1304 = vmatprep.mubr.bf16.mxu0 0
    %1305 = vmatmul.mubr.bf16.gmra.mrb[0].mxu0 %v1267
    %v1306 = vpop.f32.mrb[0].mxu0
    %v1307 = vadd.f32 0.0, %v1306
    %v1308 = vpop.f32.mrb[0].mxu0
    %v1309 = vpop.f32.mrb[0].mxu0
    %v1310 = vpop.f32.mrb[0].mxu0
    %1311 = vdwg.mxu0
    %1312 = vrot.lane.b32.xlu0 %v341, 104
    %v1313 = vpop.permute.xlu0 %1312
    %v1315 = vsel %vm342, %v1263, 0
    %v1318 = vsel %vm458, %v1313, 0
    %1320 = vmatprep.subr.bf16.mxu0 0
    %1321 = vmatpush1.bf16.msra.mxu0 %v1318
    %1322 = vmatprep.subr.bf16.mxu0 0
    %1323 = vmatpush1.bf16.msra.mxu0 0
    %1324 = vmatprep.subr.bf16.mxu0 0
    %1325 = vmatpush1.bf16.msra.mxu0 0
    %1326 = vmatprep.subr.bf16.mxu0 0
    %1327 = vmatpush1.bf16.msra.mxu0 0
    %1328 = vmatprep.subr.bf16.mxu0 0
    %1329 = vmatpush1.bf16.msra.mxu0 0
    %1330 = vmatprep.subr.bf16.mxu0 0
    %1331 = vmatpush1.bf16.msra.mxu0 0
    %1332 = vmatprep.subr.bf16.mxu0 0
    %1333 = vmatpush1.bf16.msra.mxu0 0
    %1334 = vmatprep.subr.bf16.mxu0 0
    %1335 = vmatpush1.bf16.msra.mxu0 0
    %1336 = vmatprep.subr.bf16.mxu0 0
    %1337 = vmatpush1.bf16.msra.mxu0 0
    %1338 = vmatprep.subr.bf16.mxu0 0
    %1339 = vmatpush1.bf16.msra.mxu0 0
    %1340 = vmatprep.subr.bf16.mxu0 0
    %1341 = vmatpush1.bf16.msra.mxu0 0
    %1342 = vmatprep.subr.bf16.mxu0 0
    %1343 = vmatpush1.bf16.msra.mxu0 0
    %1344 = vmatprep.subr.bf16.mxu0 0
    %1345 = vmatpush1.bf16.msra.mxu0 0
    %1346 = vmatprep.subr.bf16.mxu0 0
    %1347 = vmatpush1.bf16.msra.mxu0 0
    %1348 = vmatprep.subr.bf16.mxu0 0
    %1349 = vmatpush1.bf16.msra.mxu0 0
    %1350 = vmatprep.subr.bf16.mxu0 0
    %1351 = vmatpush1.bf16.msra.mxu0 0
    %1352 = vmatprep.mubr.bf16.mxu0 0
    %1353 = vmatmul.mubr.bf16.gmra.mrb[0].mxu0 %v1315
    %v1354 = vpop.f32.mrb[0].mxu0
    %v1355 = vadd.f32 0.0, %v1354
    %v1356 = vpop.f32.mrb[0].mxu0
    %v1357 = vpop.f32.mrb[0].mxu0
    %v1358 = vpop.f32.mrb[0].mxu0
    %1359 = vdwg.mxu0
    %v1360 = vrcp.pop %v1258
    %v1361 = vrcp.pop %v1261
    %v1362 = vmul.f32 %v1307, %v1360
    %v1363 = vmul.f32 %v1355, %v1361
    %v1364 = vpack.c.bf16 %v1363, %v1362
    %v1366 = vsel %vm342, %v1364, 0
    %v1369 = vsel %vm458, %v335, 0
    %1371 = vmatprep.subr.bf16.mxu0 0
    %1372 = vmatpush1.bf16.msra.mxu0 %v1369
    %1373 = vmatprep.subr.bf16.mxu0 0
    %1374 = vmatpush1.bf16.msra.mxu0 0
    %1375 = vmatprep.subr.bf16.mxu0 0
    %1376 = vmatpush1.bf16.msra.mxu0 0
    %1377 = vmatprep.subr.bf16.mxu0 0
    %1378 = vmatpush1.bf16.msra.mxu0 0
    %1379 = vmatprep.subr.bf16.mxu0 0
    %1380 = vmatpush1.bf16.msra.mxu0 0
    %1381 = vmatprep.subr.bf16.mxu0 0
    %1382 = vmatpush1.bf16.msra.mxu0 0
    %1383 = vmatprep.subr.bf16.mxu0 0
    %1384 = vmatpush1.bf16.msra.mxu0 0
    %1385 = vmatprep.subr.bf16.mxu0 0
    %1386 = vmatpush1.bf16.msra.mxu0 0
    %1387 = vmatprep.subr.bf16.mxu0 0
    %1388 = vmatpush1.bf16.msra.mxu0 0
    %1389 = vmatprep.subr.bf16.mxu0 0
    %1390 = vmatpush1.bf16.msra.mxu0 0
    %1391 = vmatprep.subr.bf16.mxu0 0
    %1392 = vmatpush1.bf16.msra.mxu0 0
    %1393 = vmatprep.subr.bf16.mxu0 0
    %1394 = vmatpush1.bf16.msra.mxu0 0
    %1395 = vmatprep.subr.bf16.mxu0 0
    %1396 = vmatpush1.bf16.msra.mxu0 0
    %1397 = vmatprep.subr.bf16.mxu0 0
    %1398 = vmatpush1.bf16.msra.mxu0 0
    %1399 = vmatprep.subr.bf16.mxu0 0
    %1400 = vmatpush1.bf16.msra.mxu0 0
    %1401 = vmatprep.subr.bf16.mxu0 0
    %1402 = vmatpush1.bf16.msra.mxu0 0
    %1403 = vmatprep.mubr.bf16.mxu0 0
    %1404 = vmatmul.mubr.bf16.gmra.mrb[0].mxu0 %v1366
    %v1405 = vpop.f32.mrb[0].mxu0
    %v1406 = vadd.f32 0.0, %v1405
    %v1407 = vpop.f32.mrb[0].mxu0
    %v1408 = vpop.f32.mrb[0].mxu0
    %v1409 = vadd.f32 0.0, %v1408
    %v1410 = vpop.f32.mrb[0].mxu0
    %1411 = vdwg.mxu0
    %v1412 = vadd.f32 %v1142, %v1406
    %v1413 = vadd.f32 %v1143, %v1409
    %v1414 = vadd.f32 %v1412, %v132
    %v1415 = vadd.f32 %v1413, %v133
    %v1416 = vsel %vm155, %v1414, 0.0
    %1417 = vadd.xlane.f32.xlu0 %v1416
    %v1418 = vpop.xlane.xlu0 %1417
    %v1419 = vsel %vm155, %v1415, 0.0
    %1420 = vadd.xlane.f32.xlu0 %v1419
    %v1421 = vpop.xlane.xlu0 %1420
    %v1422 = vrcp.pop 32.0
    %v1423 = vmul.f32 %v1418, %v1422
    %v1424 = vmul.f32 %v1421, %v1422
    %v1425 = vsub.f32 %v1414, %v1423
    %v1426 = vsub.f32 %v1415, %v1424
    %v1427 = vmul.f32 %v1425, %v1425
    %v1428 = vmul.f32 %v1426, %v1426
    %v1429 = vsel %vm155, %v1427, 0.0
    %1430 = vadd.xlane.f32.xlu0 %v1429
    %v1431 = vpop.xlane.xlu0 %1430
    %v1432 = vsel %vm155, %v1428, 0.0
    %1433 = vadd.xlane.f32.xlu0 %v1432
    %v1434 = vpop.xlane.xlu0 %1433
    %v1435 = vmul.f32 %v1431, %v1422
    %v1436 = vmul.f32 %v1434, %v1422
    %v1437 = vadd.f32 %v1435, 1e-05
    %v1438 = vadd.f32 %v1436, 1e-05
    %v1439 = vrsqrt.pop %v1437
    %v1440 = vrsqrt.pop %v1438
    %v1441 = vmul.f32 %v1425, %v1439
    %v1442 = vmul.f32 %v1426, %v1440
    %v1443 = vld [vmem:[%s8] sm:$0x1]
    %v1445 = vlaneseq
    %v1446 = vshrl.u32 %v1445, 7
    %v1447 = vsub.s32 0, %v1446
    %v1448 = vrot.slane %v1443, %v1447
    %v1450 = vmul.f32 %v1441, %v1448
    %v1451 = vmul.f32 %v1442, %v1448
    %v1452 = vld [vmem:[%s9] sm:$0x1]
    %v1454 = vlaneseq
    %v1455 = vshrl.u32 %v1454, 7
    %v1456 = vsub.s32 0, %v1455
    %v1457 = vrot.slane %v1452, %v1456
    %v1459 = vadd.f32 %v1450, %v1457
    %v1460 = vadd.f32 %v1451, %v1457
    %1461 = vst.msk [vmem:[#allocation14] sm:$0xff] %vm155, %v1459
    %1462 = vst.msk [vmem:[#allocation14 + $0x8] sm:$0xff] %vm155, %v1460
    // Predicated region
    $region70: #{tpu_custom_call.1} parent=1 // pred_check
      _
    $region71: #{tpu_custom_call.1} parent=1 // pred_check_branch
      %1464 = sbr.rel (0) target = $region73
    $region72: #{tpu_custom_call.1} parent=1 // pred_region
      %s1466 = ssub.s32 256, 256
      %1467 = vsyncadd [#allocation4], %s1466
      %s1468 = sshll.u32 [#allocation14], 4
      %s1469 = int_to_ptr.vmem [resolvable:$true] %s1468
      %1474 = dma.vmem_to_hbm [thread:$0]  %s1469, 256, %s10, [#allocation4], 128, 128, 8
    $region73: #{tpu_custom_call.1} parent=1 // pred_fallthru
      _
    // Predicated region
    $region74: #{tpu_custom_call.1} parent=1 // pred_check
      _
    $region75: #{tpu_custom_call.1} parent=1 // pred_check_branch
      %1476 = sbr.rel (0) target = $region77
    $region76: #{tpu_custom_call.1} parent=1 // pred_region
      %1477 = dma.done [#allocation4], 256
    $region77: #{tpu_custom_call.1} parent=1 // pred_fallthru
      _
    %1478 = vsyncpa [#allocation3], 1
    %1479 = vsyncpa [#allocation6], 1
    %1480 = vsyncpa [#allocation9], 1
    %1481 = vsyncpa [#allocation12], 1
    %1482 = vsyncpa [#allocation4], 1

</llo_original>
